<compile_context>
chip_gen: v7x
topology: tpu7x:2x2x1
jax: 0.10.0
libtpu: 0.0.40
codegen_flags: <defaults>
</compile_context>

<pallas_src>
import math
import functools

import jax
import jax.numpy as jnp
from jax.experimental import pallas as pl
from jax.experimental.pallas import tpu as pltpu

B, A, T, D, H = 2, 8, 8, 32, 4        # T_size == T == A; hist_len irrelevant here
EPS = 1e-5


def _layer_norm(v, w, b):
    mu = jnp.mean(v, axis=-1, keepdims=True)
    var = jnp.mean((v - mu) ** 2, axis=-1, keepdims=True)
    return (v - mu) * jax.lax.rsqrt(var + EPS) * w + b


def _erf_approx(z):
    # Abramowitz & Stegun 7.1.26, max abs error ~1.5e-7 -> exact-GELU within fp32 noise.
    a1, a2, a3, a4, a5 = 0.254829592, -0.284496736, 1.421413741, -1.453152027, 1.061405429
    pp = 0.3275911
    sgn = jnp.where(z >= 0.0, 1.0, -1.0)
    az = jnp.abs(z)
    # Reciprocal on the EUP slot (otherwise idle) instead of a VALU divide.
    t = pl.reciprocal(1.0 + pp * az, approx=False)
    poly = t * (a1 + t * (a2 + t * (a3 + t * (a4 + t * a5))))
    return sgn * (1.0 - poly * jnp.exp(-az * az))


def cross_attention_block_kernel(
        x_ref, cx_ref, expand_ref, vecs_ref, wvc_ref, wfc_ref, bfc_ref, wp_ref,
        o_ref):
    vecs = vecs_ref[...]                       # (6, D) packed small vectors
    ln1w, ln1b = vecs[0:1, :], vecs[1:2, :]
    bvc = vecs[2:3, :]
    ln2w, ln2b = vecs[3:4, :], vecs[4:5, :]
    bp = vecs[5:6, :]

    # ---- x = ln_1(x) ----
    x_ln = _layer_norm(x_ref[...], ln1w, ln1b)                        # (rows, D)

    # ---- degenerate cross attention ----
    # K/V are one kv(cx) row repeated over the T key positions, so the causal
    # softmax is exactly uniform and att @ V == V for every query row; Q and
    # the K half of wkv never affect the output.  The remaining V -> c_proj
    # chain is the pre-folded affine map (wvc, bvc): one matmul per group row.
    y_g = jnp.dot(cx_ref[...], wvc_ref[...],
                  preferred_element_type=jnp.float32) + bvc           # (B*A, D)
    # Broadcast each (batch, agent) group row to its T consecutive query rows
    # via the constant one-hot expansion matrix (precomputed kernel input).
    y = jnp.dot(expand_ref[...], y_g, preferred_element_type=jnp.float32)  # (rows, D)

    # ---- residual uses the ln_1 output (exactly as the torch forward does) ----
    x1 = x_ln + y

    # ---- x = ln_2(x); x = x + mlp(x) ----
    x2 = _layer_norm(x1, ln2w, ln2b)
    hh = jnp.dot(x2, wfc_ref[...], preferred_element_type=jnp.float32) + bfc_ref[...]
    hh = 0.5 * hh * (1.0 + _erf_approx(hh * (1.0 / math.sqrt(2.0))))  # exact GELU
    mlp_out = jnp.dot(hh, wp_ref[...], preferred_element_type=jnp.float32) + bp

    o_ref[...] = (x2 + mlp_out).astype(o_ref.dtype)


def pack_params(params, d):
    """One-time prep of kernel-ready weights.

    Drops dead wq/bq and the K half of wkv (repeated-KV attention), and folds
    the V projection and c_proj into one affine map: wvc = wv @ wc,
    bvc = bv @ wc + bc (exact linear algebra; fp32 re-association noise ~1e-7).
    """
    wv = params["wkv"][:, d:]
    bv = params["bkv"][:, d:]
    wvc = wv @ params["wc"]                               # (D, D)
    bvc = bv @ params["wc"] + params["bc"]                # (1, D)
    vecs = jnp.concatenate(
        [params["ln1_w"], params["ln1_b"], bvc,
         params["ln2_w"], params["ln2_b"], params["bp"]], axis=0)     # (6, D)
    return dict(vecs=vecs, wvc=wvc, wfc=params["wfc"],
                bfc=params["bfc"], wp=params["wp"])


def cross_attention_block(x, cx, kparams, *, num_heads):
    Bx, Ax, Tx, Dx = x.shape
    assert Dx % num_heads == 0
    # The degenerate-attention shortcut relies on the module's
    # kv(cx)[..., None, :].repeat(1, 1, T, 1) structure: one context row per
    # (batch, agent) group, repeated across all T key positions.
    assert cx.shape == (Bx, Ax, Dx)
    BA = Bx * Ax
    rows = BA * Tx
    x_flat = x.reshape(rows, Dx)          # metadata-only reshape
    cx_flat = cx.reshape(BA, Dx)

    # Constant one-hot (rows, BA) group->row expansion; constant-folded by XLA
    # under jit, so it costs nothing at runtime and nothing inside the kernel.
    expand = (jnp.arange(rows, dtype=jnp.int32)[:, None] // Tx
              == jnp.arange(BA, dtype=jnp.int32)[None, :]).astype(jnp.float32)

    args = [x_flat, cx_flat, expand, kparams["vecs"], kparams["wvc"],
            kparams["wfc"], kparams["bfc"], kparams["wp"]]

    def full_spec(a):
        nd = a.ndim
        return pl.BlockSpec(a.shape, lambda i, nd=nd: (0,) * nd)

    # Single sequential grid step: the whole problem fits VMEM many times over
    # on v5e/v6e/v7x; any split only adds per-step fixed overhead.
    out = pl.pallas_call(
        cross_attention_block_kernel,
        out_shape=jax.ShapeDtypeStruct((rows, Dx), x.dtype),
        grid=(1,),
        in_specs=[full_spec(a) for a in args],
        out_specs=pl.BlockSpec((rows, Dx), lambda i: (0, 0)),
        compiler_params=pltpu.CompilerParams(dimension_semantics=("arbitrary",)),
    )(*args)
    return out.reshape(Bx, Ax, Tx, Dx)


def init_params(key, d):
    keys = jax.random.split(key, 5)

    def lin(k, fan_in, fan_out):
        bound = 1.0 / math.sqrt(fan_in)          # PyTorch nn.Linear default init bounds
        kw, kb = jax.random.split(k)
        w = jax.random.uniform(kw, (fan_in, fan_out), jnp.float32, -bound, bound)
        b = jax.random.uniform(kb, (1, fan_out), jnp.float32, -bound, bound)
        return w, b

    wq, bq = lin(keys[0], d, d)
    wkv, bkv = lin(keys[1], d, 2 * d)
    wc, bc = lin(keys[2], d, d)
    wfc, bfc = lin(keys[3], d, 4 * d)
    wp, bp = lin(keys[4], 4 * d, d)
    return dict(
        ln1_w=jnp.ones((1, d), jnp.float32), ln1_b=jnp.zeros((1, d), jnp.float32),
        ln2_w=jnp.ones((1, d), jnp.float32), ln2_b=jnp.zeros((1, d), jnp.float32),
        wq=wq, bq=bq, wkv=wkv, bkv=bkv, wc=wc, bc=bc,
        wfc=wfc, bfc=bfc, wp=wp, bp=bp,
    )


def reference(x, cx, p, *, num_heads):
    """Pure-JAX mirror of the PyTorch forward (full softmax path, for validation)."""
    Bx, Ax, Tx, Dx = x.shape
    hd = Dx // num_heads

    def ln(v, w, b):
        mu = v.mean(-1, keepdims=True)
        var = ((v - mu) ** 2).mean(-1, keepdims=True)
        return (v - mu) / jnp.sqrt(var + EPS) * w + b

    xl = ln(x, p["ln1_w"], p["ln1_b"])
    Q = xl @ p["wq"] + p["bq"]
    KV = cx @ p["wkv"] + p["bkv"]                          # (B, A, 2D)
    KV = jnp.repeat(KV[:, :, None, :], Tx, axis=2)         # (B, A, T, 2D)
    K, V = KV[..., :Dx], KV[..., Dx:]

    def heads(z):
        return z.reshape(Bx, Ax, Tx, num_heads, hd).transpose(0, 1, 3, 2, 4)

    Qh, Kh, Vh = heads(Q), heads(K), heads(V)
    att = jnp.einsum("bahqd,bahkd->bahqk", Qh, Kh) / math.sqrt(hd)
    causal = jnp.tril(jnp.ones((Tx, Tx)))
    att = jnp.where(causal == 0, -jnp.inf, att)
    att = jax.nn.softmax(att, axis=-1)
    y = jnp.einsum("bahqk,bahkd->bahqd", att, Vh)
    y = y.transpose(0, 1, 3, 2, 4).reshape(Bx, Ax, Tx, Dx)
    y = y @ p["wc"] + p["bc"]
    x1 = xl + y
    x2 = ln(x1, p["ln2_w"], p["ln2_b"])
    hh = x2 @ p["wfc"] + p["bfc"]
    hh = 0.5 * hh * (1.0 + jax.scipy.special.erf(hh / math.sqrt(2.0)))
    m = hh @ p["wp"] + p["bp"]
    return x2 + m


if __name__ == "__main__":
    key = jax.random.PRNGKey(0)
    kx, kc, kp = jax.random.split(key, 3)
    x = jax.random.normal(kx, (B, A, T, D), jnp.float32)
    cx = jax.random.normal(kc, (B, A, D), jnp.float32)   # one context row per (batch, agent)
    params = init_params(kp, D)
    kparams = pack_params(params, D)

    fwd = jax.jit(functools.partial(cross_attention_block, num_heads=H))
    out = jax.block_until_ready(fwd(x, cx, kparams))

    ref = reference(x, cx, params, num_heads=H)
    assert out.shape == (B, A, T, D)
    err = float(jnp.max(jnp.abs(out - ref)))
    assert err < 1e-3, f"max abs error vs reference: {err}"

    print("KERNEL_OK")
</pallas_src>

<mosaic_0001>
module attributes {stable_mosaic.version = 11 : i64} {
  func.func @cross_attention_block_kernel(%arg0: i32, %arg1: memref<128x32xf32, #tpu.memory_space<vmem>>, %arg2: memref<16x32xf32, #tpu.memory_space<vmem>>, %arg3: memref<128x16xf32, #tpu.memory_space<vmem>>, %arg4: memref<6x32xf32, #tpu.memory_space<vmem>>, %arg5: memref<32x32xf32, #tpu.memory_space<vmem>>, %arg6: memref<32x128xf32, #tpu.memory_space<vmem>>, %arg7: memref<1x128xf32, #tpu.memory_space<vmem>>, %arg8: memref<128x32xf32, #tpu.memory_space<vmem>>, %arg9: memref<128x32xf32, #tpu.memory_space<vmem>>) attributes {dimension_semantics = [#tpu.dimension_semantics<arbitrary>], iteration_bounds = array<i64: 1>, scalar_prefetch = 0 : i64, scratch_operands = 0 : i64, tpu.core_type = #tpu.core_type<tc>, window_params = [{pipeline_mode = #tpu.pipeline_mode<synchronous>, transform_indices = @transform_0, window_bounds = array<i64: 128, 32>}, {pipeline_mode = #tpu.pipeline_mode<synchronous>, transform_indices = @transform_1, window_bounds = array<i64: 16, 32>}, {pipeline_mode = #tpu.pipeline_mode<synchronous>, transform_indices = @transform_2, window_bounds = array<i64: 128, 16>}, {pipeline_mode = #tpu.pipeline_mode<synchronous>, transform_indices = @transform_3, window_bounds = array<i64: 6, 32>}, {pipeline_mode = #tpu.pipeline_mode<synchronous>, transform_indices = @transform_4, window_bounds = array<i64: 32, 32>}, {pipeline_mode = #tpu.pipeline_mode<synchronous>, transform_indices = @transform_5, window_bounds = array<i64: 32, 128>}, {pipeline_mode = #tpu.pipeline_mode<synchronous>, transform_indices = @transform_6, window_bounds = array<i64: 1, 128>}, {pipeline_mode = #tpu.pipeline_mode<synchronous>, transform_indices = @transform_7, window_bounds = array<i64: 128, 32>}, {pipeline_mode = #tpu.pipeline_mode<synchronous>, transform_indices = @transform_8, window_bounds = array<i64: 128, 32>}]} {
    %c0 = arith.constant 0 : index
    %c0_0 = arith.constant 0 : index
    %0 = vector.load %arg4[%c0, %c0_0] : memref<6x32xf32, #tpu.memory_space<vmem>>, vector<6x32xf32>
    %1 = vector.extract_strided_slice %0 {offsets = [0, 0], sizes = [1, 32], strides = [1, 1]} : vector<6x32xf32> to vector<1x32xf32>
    %2 = vector.extract_strided_slice %0 {offsets = [1, 0], sizes = [1, 32], strides = [1, 1]} : vector<6x32xf32> to vector<1x32xf32>
    %3 = vector.extract_strided_slice %0 {offsets = [2, 0], sizes = [1, 32], strides = [1, 1]} : vector<6x32xf32> to vector<1x32xf32>
    %4 = vector.extract_strided_slice %0 {offsets = [3, 0], sizes = [1, 32], strides = [1, 1]} : vector<6x32xf32> to vector<1x32xf32>
    %5 = vector.extract_strided_slice %0 {offsets = [4, 0], sizes = [1, 32], strides = [1, 1]} : vector<6x32xf32> to vector<1x32xf32>
    %6 = vector.extract_strided_slice %0 {offsets = [5, 0], sizes = [1, 32], strides = [1, 1]} : vector<6x32xf32> to vector<1x32xf32>
    %c0_1 = arith.constant 0 : index
    %c0_2 = arith.constant 0 : index
    %7 = vector.load %arg1[%c0_1, %c0_2] : memref<128x32xf32, #tpu.memory_space<vmem>>, vector<128x32xf32>
    %cst = arith.constant dense<0.000000e+00> : vector<128xf32>
    %8 = vector.multi_reduction <add>, %7, %cst [1] : vector<128x32xf32> to vector<128xf32>
    %9 = vector.shape_cast %8 : vector<128xf32> to vector<128x1xf32>
    %cst_3 = arith.constant 3.200000e+01 : f32
    %10 = vector.broadcast %cst_3 : f32 to vector<128x1xf32>
    %11 = arith.divf %9, %10 : vector<128x1xf32>
    %12 = vector.broadcast %11 : vector<128x1xf32> to vector<128x32xf32>
    %13 = arith.subf %7, %12 : vector<128x32xf32>
    %14 = arith.mulf %13, %13 : vector<128x32xf32>
    %cst_4 = arith.constant dense<0.000000e+00> : vector<128xf32>
    %15 = vector.multi_reduction <add>, %14, %cst_4 [1] : vector<128x32xf32> to vector<128xf32>
    %16 = vector.shape_cast %15 : vector<128xf32> to vector<128x1xf32>
    %cst_5 = arith.constant 3.200000e+01 : f32
    %17 = vector.broadcast %cst_5 : f32 to vector<128x1xf32>
    %18 = arith.divf %16, %17 : vector<128x1xf32>
    %19 = vector.broadcast %11 : vector<128x1xf32> to vector<128x32xf32>
    %20 = arith.subf %7, %19 : vector<128x32xf32>
    %cst_6 = arith.constant 9.99999974E-6 : f32
    %21 = vector.broadcast %cst_6 : f32 to vector<128x1xf32>
    %22 = arith.addf %18, %21 : vector<128x1xf32>
    %23 = math.rsqrt %22 : vector<128x1xf32>
    %24 = vector.broadcast %23 : vector<128x1xf32> to vector<128x32xf32>
    %25 = arith.mulf %20, %24 : vector<128x32xf32>
    %26 = vector.broadcast %1 : vector<1x32xf32> to vector<128x32xf32>
    %27 = arith.mulf %25, %26 : vector<128x32xf32>
    %28 = vector.broadcast %2 : vector<1x32xf32> to vector<128x32xf32>
    %29 = arith.addf %27, %28 : vector<128x32xf32>
    %c0_7 = arith.constant 0 : index
    %c0_8 = arith.constant 0 : index
    %30 = vector.load %arg2[%c0_7, %c0_8] : memref<16x32xf32, #tpu.memory_space<vmem>>, vector<16x32xf32>
    %c0_9 = arith.constant 0 : index
    %c0_10 = arith.constant 0 : index
    %31 = vector.load %arg5[%c0_9, %c0_10] : memref<32x32xf32, #tpu.memory_space<vmem>>, vector<32x32xf32>
    %cst_11 = arith.constant dense<0.000000e+00> : vector<16x32xf32>
    %32 = tpu.matmul %30, %31, %cst_11 {dimension_numbers = #tpu.dot_dimension_numbers<[1], [0], [0], [1], [0, 0, 1, 1], [], []>} : vector<16x32xf32>, vector<32x32xf32>, vector<16x32xf32> -> vector<16x32xf32>
    %33 = vector.broadcast %3 : vector<1x32xf32> to vector<16x32xf32>
    %34 = arith.addf %32, %33 : vector<16x32xf32>
    %c0_12 = arith.constant 0 : index
    %c0_13 = arith.constant 0 : index
    %35 = vector.load %arg3[%c0_12, %c0_13] : memref<128x16xf32, #tpu.memory_space<vmem>>, vector<128x16xf32>
    %cst_14 = arith.constant dense<0.000000e+00> : vector<128x32xf32>
    %36 = tpu.matmul %35, %34, %cst_14 {dimension_numbers = #tpu.dot_dimension_numbers<[1], [0], [0], [1], [0, 0, 1, 1], [], []>} : vector<128x16xf32>, vector<16x32xf32>, vector<128x32xf32> -> vector<128x32xf32>
    %37 = arith.addf %29, %36 : vector<128x32xf32>
    %cst_15 = arith.constant dense<0.000000e+00> : vector<128xf32>
    %38 = vector.multi_reduction <add>, %37, %cst_15 [1] : vector<128x32xf32> to vector<128xf32>
    %39 = vector.shape_cast %38 : vector<128xf32> to vector<128x1xf32>
    %cst_16 = arith.constant 3.200000e+01 : f32
    %40 = vector.broadcast %cst_16 : f32 to vector<128x1xf32>
    %41 = arith.divf %39, %40 : vector<128x1xf32>
    %42 = vector.broadcast %41 : vector<128x1xf32> to vector<128x32xf32>
    %43 = arith.subf %37, %42 : vector<128x32xf32>
    %44 = arith.mulf %43, %43 : vector<128x32xf32>
    %cst_17 = arith.constant dense<0.000000e+00> : vector<128xf32>
    %45 = vector.multi_reduction <add>, %44, %cst_17 [1] : vector<128x32xf32> to vector<128xf32>
    %46 = vector.shape_cast %45 : vector<128xf32> to vector<128x1xf32>
    %cst_18 = arith.constant 3.200000e+01 : f32
    %47 = vector.broadcast %cst_18 : f32 to vector<128x1xf32>
    %48 = arith.divf %46, %47 : vector<128x1xf32>
    %49 = vector.broadcast %41 : vector<128x1xf32> to vector<128x32xf32>
    %50 = arith.subf %37, %49 : vector<128x32xf32>
    %cst_19 = arith.constant 9.99999974E-6 : f32
    %51 = vector.broadcast %cst_19 : f32 to vector<128x1xf32>
    %52 = arith.addf %48, %51 : vector<128x1xf32>
    %53 = math.rsqrt %52 : vector<128x1xf32>
    %54 = vector.broadcast %53 : vector<128x1xf32> to vector<128x32xf32>
    %55 = arith.mulf %50, %54 : vector<128x32xf32>
    %56 = vector.broadcast %4 : vector<1x32xf32> to vector<128x32xf32>
    %57 = arith.mulf %55, %56 : vector<128x32xf32>
    %58 = vector.broadcast %5 : vector<1x32xf32> to vector<128x32xf32>
    %59 = arith.addf %57, %58 : vector<128x32xf32>
    %c0_20 = arith.constant 0 : index
    %c0_21 = arith.constant 0 : index
    %60 = vector.load %arg6[%c0_20, %c0_21] : memref<32x128xf32, #tpu.memory_space<vmem>>, vector<32x128xf32>
    %cst_22 = arith.constant dense<0.000000e+00> : vector<128x128xf32>
    %61 = tpu.matmul %59, %60, %cst_22 {dimension_numbers = #tpu.dot_dimension_numbers<[1], [0], [0], [1], [0, 0, 1, 1], [], []>} : vector<128x32xf32>, vector<32x128xf32>, vector<128x128xf32> -> vector<128x128xf32>
    %c0_23 = arith.constant 0 : index
    %c0_24 = arith.constant 0 : index
    %62 = vector.load %arg7[%c0_23, %c0_24] : memref<1x128xf32, #tpu.memory_space<vmem>>, vector<1x128xf32>
    %63 = vector.broadcast %62 : vector<1x128xf32> to vector<128x128xf32>
    %64 = arith.addf %61, %63 : vector<128x128xf32>
    %cst_25 = arith.constant 5.000000e-01 : f32
    %65 = vector.broadcast %cst_25 : f32 to vector<128x128xf32>
    %66 = arith.mulf %65, %64 : vector<128x128xf32>
    %cst_26 = arith.constant 0.707106769 : f32
    %67 = vector.broadcast %cst_26 : f32 to vector<128x128xf32>
    %68 = arith.mulf %64, %67 : vector<128x128xf32>
    %cst_27 = arith.constant 0.000000e+00 : f32
    %69 = vector.broadcast %cst_27 : f32 to vector<128x128xf32>
    %70 = arith.cmpf oge, %68, %69 : vector<128x128xf32>
    %cst_28 = arith.constant 1.000000e+00 : f32
    %cst_29 = arith.constant -1.000000e+00 : f32
    %71 = vector.broadcast %cst_28 : f32 to vector<128x128xf32>
    %72 = vector.broadcast %cst_29 : f32 to vector<128x128xf32>
    %73 = arith.select %70, %71, %72 : vector<128x128xi1>, vector<128x128xf32>
    %74 = math.absf %68 : vector<128x128xf32>
    %cst_30 = arith.constant 0.327591091 : f32
    %75 = vector.broadcast %cst_30 : f32 to vector<128x128xf32>
    %76 = arith.mulf %75, %74 : vector<128x128xf32>
    %cst_31 = arith.constant 1.000000e+00 : f32
    %77 = vector.broadcast %cst_31 : f32 to vector<128x128xf32>
    %78 = arith.addf %77, %76 : vector<128x128xf32>
    %79 = tpu.reciprocal %78 : vector<128x128xf32> -> vector<128x128xf32>
    %cst_32 = arith.constant 1.06140542 : f32
    %80 = vector.broadcast %cst_32 : f32 to vector<128x128xf32>
    %81 = arith.mulf %79, %80 : vector<128x128xf32>
    %cst_33 = arith.constant -1.45315206 : f32
    %82 = vector.broadcast %cst_33 : f32 to vector<128x128xf32>
    %83 = arith.addf %82, %81 : vector<128x128xf32>
    %84 = arith.mulf %79, %83 : vector<128x128xf32>
    %cst_34 = arith.constant 1.42141378 : f32
    %85 = vector.broadcast %cst_34 : f32 to vector<128x128xf32>
    %86 = arith.addf %85, %84 : vector<128x128xf32>
    %87 = arith.mulf %79, %86 : vector<128x128xf32>
    %cst_35 = arith.constant -0.284496725 : f32
    %88 = vector.broadcast %cst_35 : f32 to vector<128x128xf32>
    %89 = arith.addf %88, %87 : vector<128x128xf32>
    %90 = arith.mulf %79, %89 : vector<128x128xf32>
    %cst_36 = arith.constant 0.254829586 : f32
    %91 = vector.broadcast %cst_36 : f32 to vector<128x128xf32>
    %92 = arith.addf %91, %90 : vector<128x128xf32>
    %93 = arith.mulf %79, %92 : vector<128x128xf32>
    %cst_37 = arith.constant 0.000000e+00 : f32
    %94 = vector.broadcast %cst_37 : f32 to vector<128x128xf32>
    %95 = arith.subf %94, %74 : vector<128x128xf32>
    %96 = arith.mulf %95, %74 : vector<128x128xf32>
    %97 = math.exp %96 : vector<128x128xf32>
    %98 = arith.mulf %93, %97 : vector<128x128xf32>
    %cst_38 = arith.constant 1.000000e+00 : f32
    %99 = vector.broadcast %cst_38 : f32 to vector<128x128xf32>
    %100 = arith.subf %99, %98 : vector<128x128xf32>
    %101 = arith.mulf %73, %100 : vector<128x128xf32>
    %cst_39 = arith.constant 1.000000e+00 : f32
    %102 = vector.broadcast %cst_39 : f32 to vector<128x128xf32>
    %103 = arith.addf %102, %101 : vector<128x128xf32>
    %104 = arith.mulf %66, %103 : vector<128x128xf32>
    %c0_40 = arith.constant 0 : index
    %c0_41 = arith.constant 0 : index
    %105 = vector.load %arg8[%c0_40, %c0_41] : memref<128x32xf32, #tpu.memory_space<vmem>>, vector<128x32xf32>
    %cst_42 = arith.constant dense<0.000000e+00> : vector<128x32xf32>
    %106 = tpu.matmul %104, %105, %cst_42 {dimension_numbers = #tpu.dot_dimension_numbers<[1], [0], [0], [1], [0, 0, 1, 1], [], []>} : vector<128x128xf32>, vector<128x32xf32>, vector<128x32xf32> -> vector<128x32xf32>
    %107 = vector.broadcast %6 : vector<1x32xf32> to vector<128x32xf32>
    %108 = arith.addf %106, %107 : vector<128x32xf32>
    %109 = arith.addf %59, %108 : vector<128x32xf32>
    %c0_43 = arith.constant 0 : index
    %c0_44 = arith.constant 0 : index
    %110 = vector.load %arg9[%c0_43, %c0_44] : memref<128x32xf32, #tpu.memory_space<vmem>>, vector<128x32xf32>
    tpu.vector_store %arg9[%c0_43, %c0_44], %109 {strides = array<i32>} : memref<128x32xf32, #tpu.memory_space<vmem>>, vector<128x32xf32>,
    return
  }
  func.func @transform_0(%arg0: i32) -> (i32, i32) {
    %c0_i32 = arith.constant 0 : i32
    %c0_i32_0 = arith.constant 0 : i32
    %c0_i32_1 = arith.constant 0 : i32
    return %c0_i32, %c0_i32_0 : i32, i32
  }
  func.func @transform_1(%arg0: i32) -> (i32, i32) {
    %c0_i32 = arith.constant 0 : i32
    %c0_i32_0 = arith.constant 0 : i32
    %c0_i32_1 = arith.constant 0 : i32
    return %c0_i32, %c0_i32_0 : i32, i32
  }
  func.func @transform_2(%arg0: i32) -> (i32, i32) {
    %c0_i32 = arith.constant 0 : i32
    %c0_i32_0 = arith.constant 0 : i32
    %c0_i32_1 = arith.constant 0 : i32
    return %c0_i32, %c0_i32_0 : i32, i32
  }
  func.func @transform_3(%arg0: i32) -> (i32, i32) {
    %c0_i32 = arith.constant 0 : i32
    %c0_i32_0 = arith.constant 0 : i32
    %c0_i32_1 = arith.constant 0 : i32
    return %c0_i32, %c0_i32_0 : i32, i32
  }
  func.func @transform_4(%arg0: i32) -> (i32, i32) {
    %c0_i32 = arith.constant 0 : i32
    %c0_i32_0 = arith.constant 0 : i32
    %c0_i32_1 = arith.constant 0 : i32
    return %c0_i32, %c0_i32_0 : i32, i32
  }
  func.func @transform_5(%arg0: i32) -> (i32, i32) {
    %c0_i32 = arith.constant 0 : i32
    %c0_i32_0 = arith.constant 0 : i32
    %c0_i32_1 = arith.constant 0 : i32
    return %c0_i32, %c0_i32_0 : i32, i32
  }
  func.func @transform_6(%arg0: i32) -> (i32, i32) {
    %c0_i32 = arith.constant 0 : i32
    %c0_i32_0 = arith.constant 0 : i32
    %c0_i32_1 = arith.constant 0 : i32
    return %c0_i32, %c0_i32_0 : i32, i32
  }
  func.func @transform_7(%arg0: i32) -> (i32, i32) {
    %c0_i32 = arith.constant 0 : i32
    %c0_i32_0 = arith.constant 0 : i32
    %c0_i32_1 = arith.constant 0 : i32
    return %c0_i32, %c0_i32_0 : i32, i32
  }
  func.func @transform_8(%arg0: i32) -> (i32, i32) {
    %c0_i32 = arith.constant 0 : i32
    %c0_i32_0 = arith.constant 0 : i32
    %c0_i32_1 = arith.constant 0 : i32
    return %c0_i32, %c0_i32_0 : i32, i32
  }
}

</mosaic_0001>

<llo_original>
// kernel: cross_attention_block.1
$region0: #{cross_attention_block.1}
  #allocation0 [shape = 'u32[]', space=smem, size = 0x4, offset = 0x4, fixed_abs, tag = 'smem constant byte address 0x4 - core index']
  #allocation1 [shape = 'u32[144,128]{1,0:T(1,128)}', space=vmem, size = 0x12000, scoped, tag = 'internal scratch']
  %s0 = inlined_call_operand.vmem [shape: f32[128,32], index: 0, kind: input, shape index: {}]
  %s1 = inlined_call_operand.vmem [shape: f32[16,32], index: 1, kind: input, shape index: {}]
  %s2 = inlined_call_operand.vmem [shape: f32[128,16], index: 2, kind: input, shape index: {}]
  %s3 = inlined_call_operand.vmem [shape: f32[6,32], index: 3, kind: input, shape index: {}]
  %s4 = inlined_call_operand.vmem [shape: f32[32,32], index: 4, kind: input, shape index: {}]
  %s5 = inlined_call_operand.vmem [shape: f32[32,128], index: 5, kind: input, shape index: {}]
  %s6 = inlined_call_operand.vmem [shape: f32[1,128], index: 6, kind: input, shape index: {}]
  %s7 = inlined_call_operand.vmem [shape: f32[128,32], index: 7, kind: input, shape index: {}]
  %s8 = inlined_call_operand.hbm [shape: f32[128,32], index: 8, kind: output, shape index: {}]
  %s9 = sld [smem:[#allocation0]]
  $region42: #{cross_attention_block.1} parent=0
    _
  %s11 = ssub.s32 1, %s9
  %s12 = scalar_select 0, %s11, %s9
  $region1: #{cross_attention_block.1} parent=0
    #allocation2 [shape = 'u8[65536]{0}', space=vmem, size = 0x10000, scoped, tag = 'output window, operand 0, single buffered']
    #allocation3 [shape = 's32[1]{0}', space=sflag, size = 0x4, scoped, tag = 'scoped memory for cross_attention_block.1']
    %13 = vsyncpa [#allocation3], 0
    // Predicated region
    $region2: #{cross_attention_block.1} parent=1 // pred_check
      _
    $region3: #{cross_attention_block.1} parent=1 // pred_check_branch
      %15 = sbr.rel (0) target = $region5
    $region4: #{cross_attention_block.1} parent=1 // pred_region
      _
    $region5: #{cross_attention_block.1} parent=1 // pred_fallthru
      _
    // Predicated region
    $region6: #{cross_attention_block.1} parent=1 // pred_check
      _
    $region7: #{cross_attention_block.1} parent=1 // pred_check_branch
      %17 = sbr.rel (0) target = $region9
    $region8: #{cross_attention_block.1} parent=1 // pred_region
      _
    $region9: #{cross_attention_block.1} parent=1 // pred_fallthru
      _
    // Predicated region
    $region10: #{cross_attention_block.1} parent=1 // pred_check
      _
    $region11: #{cross_attention_block.1} parent=1 // pred_check_branch
      %19 = sbr.rel (0) target = $region13
    $region12: #{cross_attention_block.1} parent=1 // pred_region
      _
    $region13: #{cross_attention_block.1} parent=1 // pred_fallthru
      _
    // Predicated region
    $region14: #{cross_attention_block.1} parent=1 // pred_check
      _
    $region15: #{cross_attention_block.1} parent=1 // pred_check_branch
      %21 = sbr.rel (0) target = $region17
    $region16: #{cross_attention_block.1} parent=1 // pred_region
      _
    $region17: #{cross_attention_block.1} parent=1 // pred_fallthru
      _
    // Predicated region
    $region18: #{cross_attention_block.1} parent=1 // pred_check
      _
    $region19: #{cross_attention_block.1} parent=1 // pred_check_branch
      %23 = sbr.rel (0) target = $region21
    $region20: #{cross_attention_block.1} parent=1 // pred_region
      _
    $region21: #{cross_attention_block.1} parent=1 // pred_fallthru
      _
    // Predicated region
    $region22: #{cross_attention_block.1} parent=1 // pred_check
      _
    $region23: #{cross_attention_block.1} parent=1 // pred_check_branch
      %25 = sbr.rel (0) target = $region25
    $region24: #{cross_attention_block.1} parent=1 // pred_region
      _
    $region25: #{cross_attention_block.1} parent=1 // pred_fallthru
      _
    // Predicated region
    $region26: #{cross_attention_block.1} parent=1 // pred_check
      _
    $region27: #{cross_attention_block.1} parent=1 // pred_check_branch
      %27 = sbr.rel (0) target = $region29
    $region28: #{cross_attention_block.1} parent=1 // pred_region
      _
    $region29: #{cross_attention_block.1} parent=1 // pred_fallthru
      _
    // Predicated region
    $region30: #{cross_attention_block.1} parent=1 // pred_check
      _
    $region31: #{cross_attention_block.1} parent=1 // pred_check_branch
      %29 = sbr.rel (0) target = $region33
    $region32: #{cross_attention_block.1} parent=1 // pred_region
      _
    $region33: #{cross_attention_block.1} parent=1 // pred_fallthru
      _
    %v30 = vld [vmem:[%s3] sm:$0x3f]
    %v31 = vld [vmem:[%s0] sm:$0xff]
    %v32 = vld [vmem:[%s0 + $0x8] sm:$0xff]
    %v33 = vld [vmem:[%s0 + $0x10] sm:$0xff]
    %v34 = vld [vmem:[%s0 + $0x18] sm:$0xff]
    %v35 = vld [vmem:[%s0 + $0x20] sm:$0xff]
    %v36 = vld [vmem:[%s0 + $0x28] sm:$0xff]
    %v37 = vld [vmem:[%s0 + $0x30] sm:$0xff]
    %v38 = vld [vmem:[%s0 + $0x38] sm:$0xff]
    %v39 = vld [vmem:[%s0 + $0x40] sm:$0xff]
    %v40 = vld [vmem:[%s0 + $0x48] sm:$0xff]
    %v41 = vld [vmem:[%s0 + $0x50] sm:$0xff]
    %v42 = vld [vmem:[%s0 + $0x58] sm:$0xff]
    %v43 = vld [vmem:[%s0 + $0x60] sm:$0xff]
    %v44 = vld [vmem:[%s0 + $0x68] sm:$0xff]
    %v45 = vld [vmem:[%s0 + $0x70] sm:$0xff]
    %v46 = vld [vmem:[%s0 + $0x78] sm:$0xff]
    %vm47 = vcmask 261120
    %v48 = vsel %vm47, %v31, 0.0
    %49 = vadd.xlane.f32.xlu0 %v48
    %v50 = vpop.xlane.xlu0 %49
    %v51 = vsel %vm47, %v32, 0.0
    %52 = vadd.xlane.f32.xlu0 %v51
    %v53 = vpop.xlane.xlu0 %52
    %v54 = vsel %vm47, %v33, 0.0
    %55 = vadd.xlane.f32.xlu0 %v54
    %v56 = vpop.xlane.xlu0 %55
    %v57 = vsel %vm47, %v34, 0.0
    %58 = vadd.xlane.f32.xlu0 %v57
    %v59 = vpop.xlane.xlu0 %58
    %v60 = vsel %vm47, %v35, 0.0
    %61 = vadd.xlane.f32.xlu0 %v60
    %v62 = vpop.xlane.xlu0 %61
    %v63 = vsel %vm47, %v36, 0.0
    %64 = vadd.xlane.f32.xlu0 %v63
    %v65 = vpop.xlane.xlu0 %64
    %v66 = vsel %vm47, %v37, 0.0
    %67 = vadd.xlane.f32.xlu0 %v66
    %v68 = vpop.xlane.xlu0 %67
    %v69 = vsel %vm47, %v38, 0.0
    %70 = vadd.xlane.f32.xlu0 %v69
    %v71 = vpop.xlane.xlu0 %70
    %v72 = vsel %vm47, %v39, 0.0
    %73 = vadd.xlane.f32.xlu0 %v72
    %v74 = vpop.xlane.xlu0 %73
    %v75 = vsel %vm47, %v40, 0.0
    %76 = vadd.xlane.f32.xlu0 %v75
    %v77 = vpop.xlane.xlu0 %76
    %v78 = vsel %vm47, %v41, 0.0
    %79 = vadd.xlane.f32.xlu0 %v78
    %v80 = vpop.xlane.xlu0 %79
    %v81 = vsel %vm47, %v42, 0.0
    %82 = vadd.xlane.f32.xlu0 %v81
    %v83 = vpop.xlane.xlu0 %82
    %v84 = vsel %vm47, %v43, 0.0
    %85 = vadd.xlane.f32.xlu0 %v84
    %v86 = vpop.xlane.xlu0 %85
    %v87 = vsel %vm47, %v44, 0.0
    %88 = vadd.xlane.f32.xlu0 %v87
    %v89 = vpop.xlane.xlu0 %88
    %v90 = vsel %vm47, %v45, 0.0
    %91 = vadd.xlane.f32.xlu0 %v90
    %v92 = vpop.xlane.xlu0 %91
    %v93 = vsel %vm47, %v46, 0.0
    %94 = vadd.xlane.f32.xlu0 %v93
    %v95 = vpop.xlane.xlu0 %94
    %v96 = vrcp.pop 32.0
    %v97 = vmul.f32 %v50, %v96
    %v98 = vmul.f32 %v53, %v96
    %v99 = vmul.f32 %v56, %v96
    %v100 = vmul.f32 %v59, %v96
    %v101 = vmul.f32 %v62, %v96
    %v102 = vmul.f32 %v65, %v96
    %v103 = vmul.f32 %v68, %v96
    %v104 = vmul.f32 %v71, %v96
    %v105 = vmul.f32 %v74, %v96
    %v106 = vmul.f32 %v77, %v96
    %v107 = vmul.f32 %v80, %v96
    %v108 = vmul.f32 %v83, %v96
    %v109 = vmul.f32 %v86, %v96
    %v110 = vmul.f32 %v89, %v96
    %v111 = vmul.f32 %v92, %v96
    %v112 = vmul.f32 %v95, %v96
    %v113 = vsub.f32 %v31, %v97
    %v114 = vsub.f32 %v32, %v98
    %v115 = vsub.f32 %v33, %v99
    %v116 = vsub.f32 %v34, %v100
    %v117 = vsub.f32 %v35, %v101
    %v118 = vsub.f32 %v36, %v102
    %v119 = vsub.f32 %v37, %v103
    %v120 = vsub.f32 %v38, %v104
    %v121 = vsub.f32 %v39, %v105
    %v122 = vsub.f32 %v40, %v106
    %v123 = vsub.f32 %v41, %v107
    %v124 = vsub.f32 %v42, %v108
    %v125 = vsub.f32 %v43, %v109
    %v126 = vsub.f32 %v44, %v110
    %v127 = vsub.f32 %v45, %v111
    %v128 = vsub.f32 %v46, %v112
    %v129 = vmul.f32 %v113, %v113
    %v130 = vmul.f32 %v114, %v114
    %v131 = vmul.f32 %v115, %v115
    %v132 = vmul.f32 %v116, %v116
    %v133 = vmul.f32 %v117, %v117
    %v134 = vmul.f32 %v118, %v118
    %v135 = vmul.f32 %v119, %v119
    %v136 = vmul.f32 %v120, %v120
    %v137 = vmul.f32 %v121, %v121
    %v138 = vmul.f32 %v122, %v122
    %v139 = vmul.f32 %v123, %v123
    %v140 = vmul.f32 %v124, %v124
    %v141 = vmul.f32 %v125, %v125
    %v142 = vmul.f32 %v126, %v126
    %v143 = vmul.f32 %v127, %v127
    %v144 = vmul.f32 %v128, %v128
    %v145 = vsel %vm47, %v129, 0.0
    %146 = vadd.xlane.f32.xlu0 %v145
    %v147 = vpop.xlane.xlu0 %146
    %v148 = vsel %vm47, %v130, 0.0
    %149 = vadd.xlane.f32.xlu0 %v148
    %v150 = vpop.xlane.xlu0 %149
    %v151 = vsel %vm47, %v131, 0.0
    %152 = vadd.xlane.f32.xlu0 %v151
    %v153 = vpop.xlane.xlu0 %152
    %v154 = vsel %vm47, %v132, 0.0
    %155 = vadd.xlane.f32.xlu0 %v154
    %v156 = vpop.xlane.xlu0 %155
    %v157 = vsel %vm47, %v133, 0.0
    %158 = vadd.xlane.f32.xlu0 %v157
    %v159 = vpop.xlane.xlu0 %158
    %v160 = vsel %vm47, %v134, 0.0
    %161 = vadd.xlane.f32.xlu0 %v160
    %v162 = vpop.xlane.xlu0 %161
    %v163 = vsel %vm47, %v135, 0.0
    %164 = vadd.xlane.f32.xlu0 %v163
    %v165 = vpop.xlane.xlu0 %164
    %v166 = vsel %vm47, %v136, 0.0
    %167 = vadd.xlane.f32.xlu0 %v166
    %v168 = vpop.xlane.xlu0 %167
    %v169 = vsel %vm47, %v137, 0.0
    %170 = vadd.xlane.f32.xlu0 %v169
    %v171 = vpop.xlane.xlu0 %170
    %v172 = vsel %vm47, %v138, 0.0
    %173 = vadd.xlane.f32.xlu0 %v172
    %v174 = vpop.xlane.xlu0 %173
    %v175 = vsel %vm47, %v139, 0.0
    %176 = vadd.xlane.f32.xlu0 %v175
    %v177 = vpop.xlane.xlu0 %176
    %v178 = vsel %vm47, %v140, 0.0
    %179 = vadd.xlane.f32.xlu0 %v178
    %v180 = vpop.xlane.xlu0 %179
    %v181 = vsel %vm47, %v141, 0.0
    %182 = vadd.xlane.f32.xlu0 %v181
    %v183 = vpop.xlane.xlu0 %182
    %v184 = vsel %vm47, %v142, 0.0
    %185 = vadd.xlane.f32.xlu0 %v184
    %v186 = vpop.xlane.xlu0 %185
    %v187 = vsel %vm47, %v143, 0.0
    %188 = vadd.xlane.f32.xlu0 %v187
    %v189 = vpop.xlane.xlu0 %188
    %v190 = vsel %vm47, %v144, 0.0
    %191 = vadd.xlane.f32.xlu0 %v190
    %v192 = vpop.xlane.xlu0 %191
    %v193 = vmul.f32 %v147, %v96
    %v194 = vmul.f32 %v150, %v96
    %v195 = vmul.f32 %v153, %v96
    %v196 = vmul.f32 %v156, %v96
    %v197 = vmul.f32 %v159, %v96
    %v198 = vmul.f32 %v162, %v96
    %v199 = vmul.f32 %v165, %v96
    %v200 = vmul.f32 %v168, %v96
    %v201 = vmul.f32 %v171, %v96
    %v202 = vmul.f32 %v174, %v96
    %v203 = vmul.f32 %v177, %v96
    %v204 = vmul.f32 %v180, %v96
    %v205 = vmul.f32 %v183, %v96
    %v206 = vmul.f32 %v186, %v96
    %v207 = vmul.f32 %v189, %v96
    %v208 = vmul.f32 %v192, %v96
    %v209 = vadd.f32 %v193, 1e-05
    %v210 = vadd.f32 %v194, 1e-05
    %v211 = vadd.f32 %v195, 1e-05
    %v212 = vadd.f32 %v196, 1e-05
    %v213 = vadd.f32 %v197, 1e-05
    %v214 = vadd.f32 %v198, 1e-05
    %v215 = vadd.f32 %v199, 1e-05
    %v216 = vadd.f32 %v200, 1e-05
    %v217 = vadd.f32 %v201, 1e-05
    %v218 = vadd.f32 %v202, 1e-05
    %v219 = vadd.f32 %v203, 1e-05
    %v220 = vadd.f32 %v204, 1e-05
    %v221 = vadd.f32 %v205, 1e-05
    %v222 = vadd.f32 %v206, 1e-05
    %v223 = vadd.f32 %v207, 1e-05
    %v224 = vadd.f32 %v208, 1e-05
    %v225 = vrsqrt.pop %v209
    %v226 = vrsqrt.pop %v210
    %v227 = vrsqrt.pop %v211
    %v228 = vrsqrt.pop %v212
    %v229 = vrsqrt.pop %v213
    %v230 = vrsqrt.pop %v214
    %v231 = vrsqrt.pop %v215
    %v232 = vrsqrt.pop %v216
    %v233 = vrsqrt.pop %v217
    %v234 = vrsqrt.pop %v218
    %v235 = vrsqrt.pop %v219
    %v236 = vrsqrt.pop %v220
    %v237 = vrsqrt.pop %v221
    %v238 = vrsqrt.pop %v222
    %v239 = vrsqrt.pop %v223
    %v240 = vrsqrt.pop %v224
    %v241 = vmul.f32 %v113, %v225
    %v242 = vmul.f32 %v114, %v226
    %v243 = vmul.f32 %v115, %v227
    %v244 = vmul.f32 %v116, %v228
    %v245 = vmul.f32 %v117, %v229
    %v246 = vmul.f32 %v118, %v230
    %v247 = vmul.f32 %v119, %v231
    %v248 = vmul.f32 %v120, %v232
    %v249 = vmul.f32 %v121, %v233
    %v250 = vmul.f32 %v122, %v234
    %v251 = vmul.f32 %v123, %v235
    %v252 = vmul.f32 %v124, %v236
    %v253 = vmul.f32 %v125, %v237
    %v254 = vmul.f32 %v126, %v238
    %v255 = vmul.f32 %v127, %v239
    %v256 = vmul.f32 %v128, %v240
    %v257 = vlaneseq
    %v258 = vshrl.u32 %v257, 7
    %v259 = vsub.s32 0, %v258
    %v260 = vrot.slane %v30, %v259
    %v261 = vmul.f32 %v241, %v260
    %v262 = vmul.f32 %v242, %v260
    %v263 = vmul.f32 %v243, %v260
    %v264 = vmul.f32 %v244, %v260
    %v265 = vmul.f32 %v245, %v260
    %v266 = vmul.f32 %v246, %v260
    %v267 = vmul.f32 %v247, %v260
    %v268 = vmul.f32 %v248, %v260
    %v269 = vmul.f32 %v249, %v260
    %v270 = vmul.f32 %v250, %v260
    %v271 = vmul.f32 %v251, %v260
    %v272 = vmul.f32 %v252, %v260
    %v273 = vmul.f32 %v253, %v260
    %v274 = vmul.f32 %v254, %v260
    %v275 = vmul.f32 %v255, %v260
    %v276 = vmul.f32 %v256, %v260
    %v277 = vlaneseq
    %v278 = vshrl.u32 %v277, 7
    %v279 = vsub.s32 1, %v278
    %v280 = vrot.slane %v30, %v279
    %v281 = vadd.f32 %v261, %v280
    %v282 = vadd.f32 %v262, %v280
    %v283 = vadd.f32 %v263, %v280
    %v284 = vadd.f32 %v264, %v280
    %v285 = vadd.f32 %v265, %v280
    %v286 = vadd.f32 %v266, %v280
    %v287 = vadd.f32 %v267, %v280
    %v288 = vadd.f32 %v268, %v280
    %v289 = vadd.f32 %v269, %v280
    %v290 = vadd.f32 %v270, %v280
    %v291 = vadd.f32 %v271, %v280
    %v292 = vadd.f32 %v272, %v280
    %v293 = vadd.f32 %v273, %v280
    %v294 = vadd.f32 %v274, %v280
    %v295 = vadd.f32 %v275, %v280
    %v296 = vadd.f32 %v276, %v280
    %v297 = vld [vmem:[%s1] sm:$0xff]
    %v298 = vld [vmem:[%s1 + $0x8] sm:$0xff]
    %v299 = vld [vmem:[%s4] sm:$0xff]
    %v300 = vld [vmem:[%s4 + $0x8] sm:$0xff]
    %v301 = vld [vmem:[%s4 + $0x10] sm:$0xff]
    %v302 = vld [vmem:[%s4 + $0x18] sm:$0xff]
    %v303 = vlaneseq
    %v304 = vshrl.u32 %v303, 7
    %v305 = vsub.s32 2, %v304
    %v306 = vrot.slane %v30, %v305
    %v308 = vsel %vm47, %v297, 0
    %v311 = vsel %vm47, %v298, 0
    %313 = vmatprep.subr.mxu0 0.0
    %314 = vmatpush1.msra.mxu0 %v299
    %315 = vmatprep.subr.mxu0 0.0
    %316 = vmatpush1.msra.mxu0 %v300
    %317 = vmatprep.subr.mxu0 0.0
    %318 = vmatpush1.msra.mxu0 %v301
    %319 = vmatprep.subr.mxu0 0.0
    %320 = vmatpush1.msra.mxu0 %v302
    %321 = vmatprep.subr.mxu0 0.0
    %322 = vmatpush1.msra.mxu0 0.0
    %323 = vmatprep.subr.mxu0 0.0
    %324 = vmatpush1.msra.mxu0 0.0
    %325 = vmatprep.subr.mxu0 0.0
    %326 = vmatpush1.msra.mxu0 0.0
    %327 = vmatprep.subr.mxu0 0.0
    %328 = vmatpush1.msra.mxu0 0.0
    %329 = vmatprep.subr.mxu0 0.0
    %330 = vmatpush1.msra.mxu0 0.0
    %331 = vmatprep.subr.mxu0 0.0
    %332 = vmatpush1.msra.mxu0 0.0
    %333 = vmatprep.subr.mxu0 0.0
    %334 = vmatpush1.msra.mxu0 0.0
    %335 = vmatprep.subr.mxu0 0.0
    %336 = vmatpush1.msra.mxu0 0.0
    %337 = vmatprep.subr.mxu0 0.0
    %338 = vmatpush1.msra.mxu0 0.0
    %339 = vmatprep.subr.mxu0 0.0
    %340 = vmatpush1.msra.mxu0 0.0
    %341 = vmatprep.subr.mxu0 0.0
    %342 = vmatpush1.msra.mxu0 0.0
    %343 = vmatprep.subr.mxu0 0.0
    %344 = vmatpush1.msra.mxu0 0.0
    %345 = vmatprep.subr.mxu0 0.0
    %346 = vmatpush1.msra.mxu0 0.0
    %347 = vmatprep.subr.mxu0 0.0
    %348 = vmatpush1.msra.mxu0 0.0
    %349 = vmatprep.subr.mxu0 0.0
    %350 = vmatpush1.msra.mxu0 0.0
    %351 = vmatprep.subr.mxu0 0.0
    %352 = vmatpush1.msra.mxu0 0.0
    %353 = vmatprep.subr.mxu0 0.0
    %354 = vmatpush1.msra.mxu0 0.0
    %355 = vmatprep.subr.mxu0 0.0
    %356 = vmatpush1.msra.mxu0 0.0
    %357 = vmatprep.subr.mxu0 0.0
    %358 = vmatpush1.msra.mxu0 0.0
    %359 = vmatprep.subr.mxu0 0.0
    %360 = vmatpush1.msra.mxu0 0.0
    %361 = vmatprep.subr.mxu0 0.0
    %362 = vmatpush1.msra.mxu0 0.0
    %363 = vmatprep.subr.mxu0 0.0
    %364 = vmatpush1.msra.mxu0 0.0
    %365 = vmatprep.subr.mxu0 0.0
    %366 = vmatpush1.msra.mxu0 0.0
    %367 = vmatprep.subr.mxu0 0.0
    %368 = vmatpush1.msra.mxu0 0.0
    %369 = vmatprep.subr.mxu0 0.0
    %370 = vmatpush1.msra.mxu0 0.0
    %371 = vmatprep.subr.mxu0 0.0
    %372 = vmatpush1.msra.mxu0 0.0
    %373 = vmatprep.subr.mxu0 0.0
    %374 = vmatpush1.msra.mxu0 0.0
    %375 = vmatprep.subr.mxu0 0.0
    %376 = vmatpush1.msra.mxu0 0.0
    %377 = vmatprep.mubr.f32.mxu0 0.0
    %378 = vmatmul.mubr.f32.gmra.mrb[0].mxu0 %v308
    %v379 = vpop.f32.mrb[0].mxu0
    %v380 = vadd.f32 %v306, %v379
    %v381 = vpop.f32.mrb[0].mxu0
    %382 = vmatprep.mubr.f32.mxu0 0.0
    %383 = vmatmul.mubr.f32.gmra.mrb[0].mxu0 %v311
    %v384 = vpop.f32.mrb[0].mxu0
    %v385 = vadd.f32 %v306, %v384
    %v386 = vpop.f32.mrb[0].mxu0
    %387 = vdwg.mxu0
    %v388 = vld [vmem:[%s2] sm:$0xff]
    %v389 = vld [vmem:[%s2 + $0x8] sm:$0xff]
    %v390 = vld [vmem:[%s2 + $0x10] sm:$0xff]
    %v391 = vld [vmem:[%s2 + $0x18] sm:$0xff]
    %v392 = vld [vmem:[%s2 + $0x20] sm:$0xff]
    %v393 = vld [vmem:[%s2 + $0x28] sm:$0xff]
    %v394 = vld [vmem:[%s2 + $0x30] sm:$0xff]
    %v395 = vld [vmem:[%s2 + $0x38] sm:$0xff]
    %v396 = vld [vmem:[%s2 + $0x40] sm:$0xff]
    %v397 = vld [vmem:[%s2 + $0x48] sm:$0xff]
    %v398 = vld [vmem:[%s2 + $0x50] sm:$0xff]
    %v399 = vld [vmem:[%s2 + $0x58] sm:$0xff]
    %v400 = vld [vmem:[%s2 + $0x60] sm:$0xff]
    %v401 = vld [vmem:[%s2 + $0x68] sm:$0xff]
    %v402 = vld [vmem:[%s2 + $0x70] sm:$0xff]
    %v403 = vld [vmem:[%s2 + $0x78] sm:$0xff]
    %vm404 = vcmask 130048
    %v406 = vsel %vm404, %v388, 0
    %v409 = vsel %vm404, %v389, 0
    %v412 = vsel %vm404, %v390, 0
    %v415 = vsel %vm404, %v391, 0
    %v418 = vsel %vm404, %v392, 0
    %v421 = vsel %vm404, %v393, 0
    %v424 = vsel %vm404, %v394, 0
    %v427 = vsel %vm404, %v395, 0
    %v430 = vsel %vm404, %v396, 0
    %v433 = vsel %vm404, %v397, 0
    %v436 = vsel %vm404, %v398, 0
    %v439 = vsel %vm404, %v399, 0
    %v442 = vsel %vm404, %v400, 0
    %v445 = vsel %vm404, %v401, 0
    %v448 = vsel %vm404, %v402, 0
    %v451 = vsel %vm404, %v403, 0
    %453 = vmatprep.subr.mxu0 0.0
    %454 = vmatpush1.msra.mxu0 %v380
    %455 = vmatprep.subr.mxu0 0.0
    %456 = vmatpush1.msra.mxu0 %v385
    %457 = vmatprep.subr.mxu0 0.0
    %458 = vmatpush1.msra.mxu0 0.0
    %459 = vmatprep.subr.mxu0 0.0
    %460 = vmatpush1.msra.mxu0 0.0
    %461 = vmatprep.subr.mxu0 0.0
    %462 = vmatpush1.msra.mxu0 0.0
    %463 = vmatprep.subr.mxu0 0.0
    %464 = vmatpush1.msra.mxu0 0.0
    %465 = vmatprep.subr.mxu0 0.0
    %466 = vmatpush1.msra.mxu0 0.0
    %467 = vmatprep.subr.mxu0 0.0
    %468 = vmatpush1.msra.mxu0 0.0
    %469 = vmatprep.subr.mxu0 0.0
    %470 = vmatpush1.msra.mxu0 0.0
    %471 = vmatprep.subr.mxu0 0.0
    %472 = vmatpush1.msra.mxu0 0.0
    %473 = vmatprep.subr.mxu0 0.0
    %474 = vmatpush1.msra.mxu0 0.0
    %475 = vmatprep.subr.mxu0 0.0
    %476 = vmatpush1.msra.mxu0 0.0
    %477 = vmatprep.subr.mxu0 0.0
    %478 = vmatpush1.msra.mxu0 0.0
    %479 = vmatprep.subr.mxu0 0.0
    %480 = vmatpush1.msra.mxu0 0.0
    %481 = vmatprep.subr.mxu0 0.0
    %482 = vmatpush1.msra.mxu0 0.0
    %483 = vmatprep.subr.mxu0 0.0
    %484 = vmatpush1.msra.mxu0 0.0
    %485 = vmatprep.subr.mxu0 0.0
    %486 = vmatpush1.msra.mxu0 0.0
    %487 = vmatprep.subr.mxu0 0.0
    %488 = vmatpush1.msra.mxu0 0.0
    %489 = vmatprep.subr.mxu0 0.0
    %490 = vmatpush1.msra.mxu0 0.0
    %491 = vmatprep.subr.mxu0 0.0
    %492 = vmatpush1.msra.mxu0 0.0
    %493 = vmatprep.subr.mxu0 0.0
    %494 = vmatpush1.msra.mxu0 0.0
    %495 = vmatprep.subr.mxu0 0.0
    %496 = vmatpush1.msra.mxu0 0.0
    %497 = vmatprep.subr.mxu0 0.0
    %498 = vmatpush1.msra.mxu0 0.0
    %499 = vmatprep.subr.mxu0 0.0
    %500 = vmatpush1.msra.mxu0 0.0
    %501 = vmatprep.subr.mxu0 0.0
    %502 = vmatpush1.msra.mxu0 0.0
    %503 = vmatprep.subr.mxu0 0.0
    %504 = vmatpush1.msra.mxu0 0.0
    %505 = vmatprep.subr.mxu0 0.0
    %506 = vmatpush1.msra.mxu0 0.0
    %507 = vmatprep.subr.mxu0 0.0
    %508 = vmatpush1.msra.mxu0 0.0
    %509 = vmatprep.subr.mxu0 0.0
    %510 = vmatpush1.msra.mxu0 0.0
    %511 = vmatprep.subr.mxu0 0.0
    %512 = vmatpush1.msra.mxu0 0.0
    %513 = vmatprep.subr.mxu0 0.0
    %514 = vmatpush1.msra.mxu0 0.0
    %515 = vmatprep.subr.mxu0 0.0
    %516 = vmatpush1.msra.mxu0 0.0
    %517 = vmatprep.mubr.f32.mxu0 0.0
    %518 = vmatmul.mubr.f32.gmra.mrb[0].mxu0 %v406
    %v519 = vpop.f32.mrb[0].mxu0
    %v520 = vadd.f32 0.0, %v519
    %v521 = vpop.f32.mrb[0].mxu0
    %522 = vmatprep.mubr.f32.mxu0 0.0
    %523 = vmatmul.mubr.f32.gmra.mrb[0].mxu0 %v409
    %v524 = vpop.f32.mrb[0].mxu0
    %v525 = vadd.f32 0.0, %v524
    %v526 = vpop.f32.mrb[0].mxu0
    %527 = vmatprep.mubr.f32.mxu0 0.0
    %528 = vmatmul.mubr.f32.gmra.mrb[0].mxu0 %v412
    %v529 = vpop.f32.mrb[0].mxu0
    %v530 = vadd.f32 0.0, %v529
    %v531 = vpop.f32.mrb[0].mxu0
    %532 = vmatprep.mubr.f32.mxu0 0.0
    %533 = vmatmul.mubr.f32.gmra.mrb[0].mxu0 %v415
    %v534 = vpop.f32.mrb[0].mxu0
    %v535 = vadd.f32 0.0, %v534
    %v536 = vpop.f32.mrb[0].mxu0
    %537 = vmatprep.mubr.f32.mxu0 0.0
    %538 = vmatmul.mubr.f32.gmra.mrb[0].mxu0 %v418
    %v539 = vpop.f32.mrb[0].mxu0
    %v540 = vadd.f32 0.0, %v539
    %v541 = vpop.f32.mrb[0].mxu0
    %542 = vmatprep.mubr.f32.mxu0 0.0
    %543 = vmatmul.mubr.f32.gmra.mrb[0].mxu0 %v421
    %v544 = vpop.f32.mrb[0].mxu0
    %v545 = vadd.f32 0.0, %v544
    %v546 = vpop.f32.mrb[0].mxu0
    %547 = vmatprep.mubr.f32.mxu0 0.0
    %548 = vmatmul.mubr.f32.gmra.mrb[0].mxu0 %v424
    %v549 = vpop.f32.mrb[0].mxu0
    %v550 = vadd.f32 0.0, %v549
    %v551 = vpop.f32.mrb[0].mxu0
    %552 = vmatprep.mubr.f32.mxu0 0.0
    %553 = vmatmul.mubr.f32.gmra.mrb[0].mxu0 %v427
    %v554 = vpop.f32.mrb[0].mxu0
    %v555 = vadd.f32 0.0, %v554
    %v556 = vpop.f32.mrb[0].mxu0
    %557 = vmatprep.mubr.f32.mxu0 0.0
    %558 = vmatmul.mubr.f32.gmra.mrb[0].mxu0 %v430
    %v559 = vpop.f32.mrb[0].mxu0
    %v560 = vadd.f32 0.0, %v559
    %v561 = vpop.f32.mrb[0].mxu0
    %562 = vmatprep.mubr.f32.mxu0 0.0
    %563 = vmatmul.mubr.f32.gmra.mrb[0].mxu0 %v433
    %v564 = vpop.f32.mrb[0].mxu0
    %v565 = vadd.f32 0.0, %v564
    %v566 = vpop.f32.mrb[0].mxu0
    %567 = vmatprep.mubr.f32.mxu0 0.0
    %568 = vmatmul.mubr.f32.gmra.mrb[0].mxu0 %v436
    %v569 = vpop.f32.mrb[0].mxu0
    %v570 = vadd.f32 0.0, %v569
    %v571 = vpop.f32.mrb[0].mxu0
    %572 = vmatprep.mubr.f32.mxu0 0.0
    %573 = vmatmul.mubr.f32.gmra.mrb[0].mxu0 %v439
    %v574 = vpop.f32.mrb[0].mxu0
    %v575 = vadd.f32 0.0, %v574
    %v576 = vpop.f32.mrb[0].mxu0
    %577 = vmatprep.mubr.f32.mxu0 0.0
    %578 = vmatmul.mubr.f32.gmra.mrb[0].mxu0 %v442
    %v579 = vpop.f32.mrb[0].mxu0
    %v580 = vadd.f32 0.0, %v579
    %v581 = vpop.f32.mrb[0].mxu0
    %582 = vmatprep.mubr.f32.mxu0 0.0
    %583 = vmatmul.mubr.f32.gmra.mrb[0].mxu0 %v445
    %v584 = vpop.f32.mrb[0].mxu0
    %v585 = vadd.f32 0.0, %v584
    %v586 = vpop.f32.mrb[0].mxu0
    %587 = vmatprep.mubr.f32.mxu0 0.0
    %588 = vmatmul.mubr.f32.gmra.mrb[0].mxu0 %v448
    %v589 = vpop.f32.mrb[0].mxu0
    %v590 = vadd.f32 0.0, %v589
    %v591 = vpop.f32.mrb[0].mxu0
    %592 = vmatprep.mubr.f32.mxu0 0.0
    %593 = vmatmul.mubr.f32.gmra.mrb[0].mxu0 %v451
    %v594 = vpop.f32.mrb[0].mxu0
    %v595 = vadd.f32 0.0, %v594
    %v596 = vpop.f32.mrb[0].mxu0
    %597 = vdwg.mxu0
    %v598 = vadd.f32 %v281, %v520
    %v599 = vadd.f32 %v282, %v525
    %v600 = vadd.f32 %v283, %v530
    %v601 = vadd.f32 %v284, %v535
    %v602 = vadd.f32 %v285, %v540
    %v603 = vadd.f32 %v286, %v545
    %v604 = vadd.f32 %v287, %v550
    %v605 = vadd.f32 %v288, %v555
    %v606 = vadd.f32 %v289, %v560
    %v607 = vadd.f32 %v290, %v565
    %v608 = vadd.f32 %v291, %v570
    %v609 = vadd.f32 %v292, %v575
    %v610 = vadd.f32 %v293, %v580
    %v611 = vadd.f32 %v294, %v585
    %v612 = vadd.f32 %v295, %v590
    %v613 = vadd.f32 %v296, %v595
    %v614 = vsel %vm47, %v598, 0.0
    %615 = vadd.xlane.f32.xlu0 %v614
    %v616 = vpop.xlane.xlu0 %615
    %v617 = vsel %vm47, %v599, 0.0
    %618 = vadd.xlane.f32.xlu0 %v617
    %v619 = vpop.xlane.xlu0 %618
    %v620 = vsel %vm47, %v600, 0.0
    %621 = vadd.xlane.f32.xlu0 %v620
    %v622 = vpop.xlane.xlu0 %621
    %v623 = vsel %vm47, %v601, 0.0
    %624 = vadd.xlane.f32.xlu0 %v623
    %v625 = vpop.xlane.xlu0 %624
    %v626 = vsel %vm47, %v602, 0.0
    %627 = vadd.xlane.f32.xlu0 %v626
    %v628 = vpop.xlane.xlu0 %627
    %v629 = vsel %vm47, %v603, 0.0
    %630 = vadd.xlane.f32.xlu0 %v629
    %v631 = vpop.xlane.xlu0 %630
    %v632 = vsel %vm47, %v604, 0.0
    %633 = vadd.xlane.f32.xlu0 %v632
    %v634 = vpop.xlane.xlu0 %633
    %v635 = vsel %vm47, %v605, 0.0
    %636 = vadd.xlane.f32.xlu0 %v635
    %v637 = vpop.xlane.xlu0 %636
    %v638 = vsel %vm47, %v606, 0.0
    %639 = vadd.xlane.f32.xlu0 %v638
    %v640 = vpop.xlane.xlu0 %639
    %v641 = vsel %vm47, %v607, 0.0
    %642 = vadd.xlane.f32.xlu0 %v641
    %v643 = vpop.xlane.xlu0 %642
    %v644 = vsel %vm47, %v608, 0.0
    %645 = vadd.xlane.f32.xlu0 %v644
    %v646 = vpop.xlane.xlu0 %645
    %v647 = vsel %vm47, %v609, 0.0
    %648 = vadd.xlane.f32.xlu0 %v647
    %v649 = vpop.xlane.xlu0 %648
    %v650 = vsel %vm47, %v610, 0.0
    %651 = vadd.xlane.f32.xlu0 %v650
    %v652 = vpop.xlane.xlu0 %651
    %v653 = vsel %vm47, %v611, 0.0
    %654 = vadd.xlane.f32.xlu0 %v653
    %v655 = vpop.xlane.xlu0 %654
    %v656 = vsel %vm47, %v612, 0.0
    %657 = vadd.xlane.f32.xlu0 %v656
    %v658 = vpop.xlane.xlu0 %657
    %v659 = vsel %vm47, %v613, 0.0
    %660 = vadd.xlane.f32.xlu0 %v659
    %v661 = vpop.xlane.xlu0 %660
    %v662 = vmul.f32 %v616, %v96
    %v663 = vmul.f32 %v619, %v96
    %v664 = vmul.f32 %v622, %v96
    %v665 = vmul.f32 %v625, %v96
    %v666 = vmul.f32 %v628, %v96
    %v667 = vmul.f32 %v631, %v96
    %v668 = vmul.f32 %v634, %v96
    %v669 = vmul.f32 %v637, %v96
    %v670 = vmul.f32 %v640, %v96
    %v671 = vmul.f32 %v643, %v96
    %v672 = vmul.f32 %v646, %v96
    %v673 = vmul.f32 %v649, %v96
    %v674 = vmul.f32 %v652, %v96
    %v675 = vmul.f32 %v655, %v96
    %v676 = vmul.f32 %v658, %v96
    %v677 = vmul.f32 %v661, %v96
    %v678 = vsub.f32 %v598, %v662
    %v679 = vsub.f32 %v599, %v663
    %v680 = vsub.f32 %v600, %v664
    %v681 = vsub.f32 %v601, %v665
    %v682 = vsub.f32 %v602, %v666
    %v683 = vsub.f32 %v603, %v667
    %v684 = vsub.f32 %v604, %v668
    %v685 = vsub.f32 %v605, %v669
    %v686 = vsub.f32 %v606, %v670
    %v687 = vsub.f32 %v607, %v671
    %v688 = vsub.f32 %v608, %v672
    %v689 = vsub.f32 %v609, %v673
    %v690 = vsub.f32 %v610, %v674
    %v691 = vsub.f32 %v611, %v675
    %v692 = vsub.f32 %v612, %v676
    %v693 = vsub.f32 %v613, %v677
    %v694 = vmul.f32 %v678, %v678
    %v695 = vmul.f32 %v679, %v679
    %v696 = vmul.f32 %v680, %v680
    %v697 = vmul.f32 %v681, %v681
    %v698 = vmul.f32 %v682, %v682
    %v699 = vmul.f32 %v683, %v683
    %v700 = vmul.f32 %v684, %v684
    %v701 = vmul.f32 %v685, %v685
    %v702 = vmul.f32 %v686, %v686
    %v703 = vmul.f32 %v687, %v687
    %v704 = vmul.f32 %v688, %v688
    %v705 = vmul.f32 %v689, %v689
    %v706 = vmul.f32 %v690, %v690
    %v707 = vmul.f32 %v691, %v691
    %v708 = vmul.f32 %v692, %v692
    %v709 = vmul.f32 %v693, %v693
    %v710 = vsel %vm47, %v694, 0.0
    %711 = vadd.xlane.f32.xlu0 %v710
    %v712 = vpop.xlane.xlu0 %711
    %v713 = vsel %vm47, %v695, 0.0
    %714 = vadd.xlane.f32.xlu0 %v713
    %v715 = vpop.xlane.xlu0 %714
    %v716 = vsel %vm47, %v696, 0.0
    %717 = vadd.xlane.f32.xlu0 %v716
    %v718 = vpop.xlane.xlu0 %717
    %v719 = vsel %vm47, %v697, 0.0
    %720 = vadd.xlane.f32.xlu0 %v719
    %v721 = vpop.xlane.xlu0 %720
    %v722 = vsel %vm47, %v698, 0.0
    %723 = vadd.xlane.f32.xlu0 %v722
    %v724 = vpop.xlane.xlu0 %723
    %v725 = vsel %vm47, %v699, 0.0
    %726 = vadd.xlane.f32.xlu0 %v725
    %v727 = vpop.xlane.xlu0 %726
    %v728 = vsel %vm47, %v700, 0.0
    %729 = vadd.xlane.f32.xlu0 %v728
    %v730 = vpop.xlane.xlu0 %729
    %v731 = vsel %vm47, %v701, 0.0
    %732 = vadd.xlane.f32.xlu0 %v731
    %v733 = vpop.xlane.xlu0 %732
    %v734 = vsel %vm47, %v702, 0.0
    %735 = vadd.xlane.f32.xlu0 %v734
    %v736 = vpop.xlane.xlu0 %735
    %v737 = vsel %vm47, %v703, 0.0
    %738 = vadd.xlane.f32.xlu0 %v737
    %v739 = vpop.xlane.xlu0 %738
    %v740 = vsel %vm47, %v704, 0.0
    %741 = vadd.xlane.f32.xlu0 %v740
    %v742 = vpop.xlane.xlu0 %741
    %v743 = vsel %vm47, %v705, 0.0
    %744 = vadd.xlane.f32.xlu0 %v743
    %v745 = vpop.xlane.xlu0 %744
    %v746 = vsel %vm47, %v706, 0.0
    %747 = vadd.xlane.f32.xlu0 %v746
    %v748 = vpop.xlane.xlu0 %747
    %v749 = vsel %vm47, %v707, 0.0
    %750 = vadd.xlane.f32.xlu0 %v749
    %v751 = vpop.xlane.xlu0 %750
    %v752 = vsel %vm47, %v708, 0.0
    %753 = vadd.xlane.f32.xlu0 %v752
    %v754 = vpop.xlane.xlu0 %753
    %v755 = vsel %vm47, %v709, 0.0
    %756 = vadd.xlane.f32.xlu0 %v755
    %v757 = vpop.xlane.xlu0 %756
    %v758 = vmul.f32 %v712, %v96
    %v759 = vmul.f32 %v715, %v96
    %v760 = vmul.f32 %v718, %v96
    %v761 = vmul.f32 %v721, %v96
    %v762 = vmul.f32 %v724, %v96
    %v763 = vmul.f32 %v727, %v96
    %v764 = vmul.f32 %v730, %v96
    %v765 = vmul.f32 %v733, %v96
    %v766 = vmul.f32 %v736, %v96
    %v767 = vmul.f32 %v739, %v96
    %v768 = vmul.f32 %v742, %v96
    %v769 = vmul.f32 %v745, %v96
    %v770 = vmul.f32 %v748, %v96
    %v771 = vmul.f32 %v751, %v96
    %v772 = vmul.f32 %v754, %v96
    %v773 = vmul.f32 %v757, %v96
    %v774 = vadd.f32 %v758, 1e-05
    %v775 = vadd.f32 %v759, 1e-05
    %v776 = vadd.f32 %v760, 1e-05
    %v777 = vadd.f32 %v761, 1e-05
    %v778 = vadd.f32 %v762, 1e-05
    %v779 = vadd.f32 %v763, 1e-05
    %v780 = vadd.f32 %v764, 1e-05
    %v781 = vadd.f32 %v765, 1e-05
    %v782 = vadd.f32 %v766, 1e-05
    %v783 = vadd.f32 %v767, 1e-05
    %v784 = vadd.f32 %v768, 1e-05
    %v785 = vadd.f32 %v769, 1e-05
    %v786 = vadd.f32 %v770, 1e-05
    %v787 = vadd.f32 %v771, 1e-05
    %v788 = vadd.f32 %v772, 1e-05
    %v789 = vadd.f32 %v773, 1e-05
    %v790 = vrsqrt.pop %v774
    %v791 = vrsqrt.pop %v775
    %v792 = vrsqrt.pop %v776
    %v793 = vrsqrt.pop %v777
    %v794 = vrsqrt.pop %v778
    %v795 = vrsqrt.pop %v779
    %v796 = vrsqrt.pop %v780
    %v797 = vrsqrt.pop %v781
    %v798 = vrsqrt.pop %v782
    %v799 = vrsqrt.pop %v783
    %v800 = vrsqrt.pop %v784
    %v801 = vrsqrt.pop %v785
    %v802 = vrsqrt.pop %v786
    %v803 = vrsqrt.pop %v787
    %v804 = vrsqrt.pop %v788
    %v805 = vrsqrt.pop %v789
    %v806 = vmul.f32 %v678, %v790
    %v807 = vmul.f32 %v679, %v791
    %v808 = vmul.f32 %v680, %v792
    %v809 = vmul.f32 %v681, %v793
    %v810 = vmul.f32 %v682, %v794
    %v811 = vmul.f32 %v683, %v795
    %v812 = vmul.f32 %v684, %v796
    %v813 = vmul.f32 %v685, %v797
    %v814 = vmul.f32 %v686, %v798
    %v815 = vmul.f32 %v687, %v799
    %v816 = vmul.f32 %v688, %v800
    %v817 = vmul.f32 %v689, %v801
    %v818 = vmul.f32 %v690, %v802
    %v819 = vmul.f32 %v691, %v803
    %v820 = vmul.f32 %v692, %v804
    %v821 = vmul.f32 %v693, %v805
    %v822 = vlaneseq
    %v823 = vshrl.u32 %v822, 7
    %v824 = vsub.s32 3, %v823
    %v825 = vrot.slane %v30, %v824
    %v826 = vmul.f32 %v806, %v825
    %v827 = vmul.f32 %v807, %v825
    %v828 = vmul.f32 %v808, %v825
    %v829 = vmul.f32 %v809, %v825
    %v830 = vmul.f32 %v810, %v825
    %v831 = vmul.f32 %v811, %v825
    %v832 = vmul.f32 %v812, %v825
    %v833 = vmul.f32 %v813, %v825
    %v834 = vmul.f32 %v814, %v825
    %v835 = vmul.f32 %v815, %v825
    %v836 = vmul.f32 %v816, %v825
    %v837 = vmul.f32 %v817, %v825
    %v838 = vmul.f32 %v818, %v825
    %v839 = vmul.f32 %v819, %v825
    %v840 = vmul.f32 %v820, %v825
    %v841 = vmul.f32 %v821, %v825
    %v842 = vlaneseq
    %v843 = vshrl.u32 %v842, 7
    %v844 = vsub.s32 4, %v843
    %v845 = vrot.slane %v30, %v844
    %v846 = vadd.f32 %v826, %v845
    %v847 = vadd.f32 %v827, %v845
    %v848 = vadd.f32 %v828, %v845
    %v849 = vadd.f32 %v829, %v845
    %v850 = vadd.f32 %v830, %v845
    %v851 = vadd.f32 %v831, %v845
    %v852 = vadd.f32 %v832, %v845
    %v853 = vadd.f32 %v833, %v845
    %v854 = vadd.f32 %v834, %v845
    %v855 = vadd.f32 %v835, %v845
    %v856 = vadd.f32 %v836, %v845
    %v857 = vadd.f32 %v837, %v845
    %v858 = vadd.f32 %v838, %v845
    %v859 = vadd.f32 %v839, %v845
    %v860 = vadd.f32 %v840, %v845
    %v861 = vadd.f32 %v841, %v845
    %v862 = vld [vmem:[%s5] sm:$0xff]
    %v863 = vld [vmem:[%s5 + $0x8] sm:$0xff]
    %v864 = vld [vmem:[%s5 + $0x10] sm:$0xff]
    %v865 = vld [vmem:[%s5 + $0x18] sm:$0xff]
    %v866 = vld [vmem:[%s6] sm:$0x1]
    %v868 = vlaneseq
    %v869 = vshrl.u32 %v868, 7
    %v870 = vsub.s32 0, %v869
    %v871 = vrot.slane %v866, %v870
    %v874 = vsel %vm47, %v846, 0
    %v877 = vsel %vm47, %v847, 0
    %v880 = vsel %vm47, %v848, 0
    %v883 = vsel %vm47, %v849, 0
    %v886 = vsel %vm47, %v850, 0
    %v889 = vsel %vm47, %v851, 0
    %v892 = vsel %vm47, %v852, 0
    %v895 = vsel %vm47, %v853, 0
    %v898 = vsel %vm47, %v854, 0
    %v901 = vsel %vm47, %v855, 0
    %v904 = vsel %vm47, %v856, 0
    %v907 = vsel %vm47, %v857, 0
    %v910 = vsel %vm47, %v858, 0
    %v913 = vsel %vm47, %v859, 0
    %v916 = vsel %vm47, %v860, 0
    %v919 = vsel %vm47, %v861, 0
    %921 = vmatprep.subr.mxu0 0.0
    %922 = vmatpush1.msra.mxu0 %v862
    %923 = vmatprep.subr.mxu0 0.0
    %924 = vmatpush1.msra.mxu0 %v863
    %925 = vmatprep.subr.mxu0 0.0
    %926 = vmatpush1.msra.mxu0 %v864
    %927 = vmatprep.subr.mxu0 0.0
    %928 = vmatpush1.msra.mxu0 %v865
    %929 = vmatprep.subr.mxu0 0.0
    %930 = vmatpush1.msra.mxu0 0.0
    %931 = vmatprep.subr.mxu0 0.0
    %932 = vmatpush1.msra.mxu0 0.0
    %933 = vmatprep.subr.mxu0 0.0
    %934 = vmatpush1.msra.mxu0 0.0
    %935 = vmatprep.subr.mxu0 0.0
    %936 = vmatpush1.msra.mxu0 0.0
    %937 = vmatprep.subr.mxu0 0.0
    %938 = vmatpush1.msra.mxu0 0.0
    %939 = vmatprep.subr.mxu0 0.0
    %940 = vmatpush1.msra.mxu0 0.0
    %941 = vmatprep.subr.mxu0 0.0
    %942 = vmatpush1.msra.mxu0 0.0
    %943 = vmatprep.subr.mxu0 0.0
    %944 = vmatpush1.msra.mxu0 0.0
    %945 = vmatprep.subr.mxu0 0.0
    %946 = vmatpush1.msra.mxu0 0.0
    %947 = vmatprep.subr.mxu0 0.0
    %948 = vmatpush1.msra.mxu0 0.0
    %949 = vmatprep.subr.mxu0 0.0
    %950 = vmatpush1.msra.mxu0 0.0
    %951 = vmatprep.subr.mxu0 0.0
    %952 = vmatpush1.msra.mxu0 0.0
    %953 = vmatprep.subr.mxu0 0.0
    %954 = vmatpush1.msra.mxu0 0.0
    %955 = vmatprep.subr.mxu0 0.0
    %956 = vmatpush1.msra.mxu0 0.0
    %957 = vmatprep.subr.mxu0 0.0
    %958 = vmatpush1.msra.mxu0 0.0
    %959 = vmatprep.subr.mxu0 0.0
    %960 = vmatpush1.msra.mxu0 0.0
    %961 = vmatprep.subr.mxu0 0.0
    %962 = vmatpush1.msra.mxu0 0.0
    %963 = vmatprep.subr.mxu0 0.0
    %964 = vmatpush1.msra.mxu0 0.0
    %965 = vmatprep.subr.mxu0 0.0
    %966 = vmatpush1.msra.mxu0 0.0
    %967 = vmatprep.subr.mxu0 0.0
    %968 = vmatpush1.msra.mxu0 0.0
    %969 = vmatprep.subr.mxu0 0.0
    %970 = vmatpush1.msra.mxu0 0.0
    %971 = vmatprep.subr.mxu0 0.0
    %972 = vmatpush1.msra.mxu0 0.0
    %973 = vmatprep.subr.mxu0 0.0
    %974 = vmatpush1.msra.mxu0 0.0
    %975 = vmatprep.subr.mxu0 0.0
    %976 = vmatpush1.msra.mxu0 0.0
    %977 = vmatprep.subr.mxu0 0.0
    %978 = vmatpush1.msra.mxu0 0.0
    %979 = vmatprep.subr.mxu0 0.0
    %980 = vmatpush1.msra.mxu0 0.0
    %981 = vmatprep.subr.mxu0 0.0
    %982 = vmatpush1.msra.mxu0 0.0
    %983 = vmatprep.subr.mxu0 0.0
    %984 = vmatpush1.msra.mxu0 0.0
    %985 = vmatprep.mubr.f32.mxu0 0.0
    %986 = vmatmul.mubr.f32.gmra.mrb[0].mxu0 %v874
    %v987 = vpop.f32.mrb[0].mxu0
    %v988 = vadd.f32 %v871, %v987
    %v989 = vpop.f32.mrb[0].mxu0
    %990 = vmatprep.mubr.f32.mxu0 0.0
    %991 = vmatmul.mubr.f32.gmra.mrb[0].mxu0 %v877
    %v992 = vpop.f32.mrb[0].mxu0
    %v993 = vadd.f32 %v871, %v992
    %v994 = vpop.f32.mrb[0].mxu0
    %995 = vmatprep.mubr.f32.mxu0 0.0
    %996 = vmatmul.mubr.f32.gmra.mrb[0].mxu0 %v880
    %v997 = vpop.f32.mrb[0].mxu0
    %v998 = vadd.f32 %v871, %v997
    %v999 = vpop.f32.mrb[0].mxu0
    %1000 = vmatprep.mubr.f32.mxu0 0.0
    %1001 = vmatmul.mubr.f32.gmra.mrb[0].mxu0 %v883
    %v1002 = vpop.f32.mrb[0].mxu0
    %v1003 = vadd.f32 %v871, %v1002
    %v1004 = vpop.f32.mrb[0].mxu0
    %1005 = vmatprep.mubr.f32.mxu0 0.0
    %1006 = vmatmul.mubr.f32.gmra.mrb[0].mxu0 %v886
    %v1007 = vpop.f32.mrb[0].mxu0
    %v1008 = vadd.f32 %v871, %v1007
    %v1009 = vpop.f32.mrb[0].mxu0
    %1010 = vmatprep.mubr.f32.mxu0 0.0
    %1011 = vmatmul.mubr.f32.gmra.mrb[0].mxu0 %v889
    %v1012 = vpop.f32.mrb[0].mxu0
    %v1013 = vadd.f32 %v871, %v1012
    %v1014 = vpop.f32.mrb[0].mxu0
    %1015 = vmatprep.mubr.f32.mxu0 0.0
    %1016 = vmatmul.mubr.f32.gmra.mrb[0].mxu0 %v892
    %v1017 = vpop.f32.mrb[0].mxu0
    %v1018 = vadd.f32 %v871, %v1017
    %v1019 = vpop.f32.mrb[0].mxu0
    %1020 = vmatprep.mubr.f32.mxu0 0.0
    %1021 = vmatmul.mubr.f32.gmra.mrb[0].mxu0 %v895
    %v1022 = vpop.f32.mrb[0].mxu0
    %v1023 = vadd.f32 %v871, %v1022
    %v1024 = vpop.f32.mrb[0].mxu0
    %1025 = vmatprep.mubr.f32.mxu0 0.0
    %1026 = vmatmul.mubr.f32.gmra.mrb[0].mxu0 %v898
    %v1027 = vpop.f32.mrb[0].mxu0
    %v1028 = vadd.f32 %v871, %v1027
    %v1029 = vpop.f32.mrb[0].mxu0
    %1030 = vmatprep.mubr.f32.mxu0 0.0
    %1031 = vmatmul.mubr.f32.gmra.mrb[0].mxu0 %v901
    %v1032 = vpop.f32.mrb[0].mxu0
    %v1033 = vadd.f32 %v871, %v1032
    %v1034 = vpop.f32.mrb[0].mxu0
    %1035 = vmatprep.mubr.f32.mxu0 0.0
    %1036 = vmatmul.mubr.f32.gmra.mrb[0].mxu0 %v904
    %v1037 = vpop.f32.mrb[0].mxu0
    %v1038 = vadd.f32 %v871, %v1037
    %v1039 = vpop.f32.mrb[0].mxu0
    %1040 = vmatprep.mubr.f32.mxu0 0.0
    %1041 = vmatmul.mubr.f32.gmra.mrb[0].mxu0 %v907
    %v1042 = vpop.f32.mrb[0].mxu0
    %v1043 = vadd.f32 %v871, %v1042
    %v1044 = vpop.f32.mrb[0].mxu0
    %1045 = vmatprep.mubr.f32.mxu0 0.0
    %1046 = vmatmul.mubr.f32.gmra.mrb[0].mxu0 %v910
    %v1047 = vpop.f32.mrb[0].mxu0
    %v1048 = vadd.f32 %v871, %v1047
    %v1049 = vpop.f32.mrb[0].mxu0
    %1050 = vmatprep.mubr.f32.mxu0 0.0
    %1051 = vmatmul.mubr.f32.gmra.mrb[0].mxu0 %v913
    %v1052 = vpop.f32.mrb[0].mxu0
    %v1053 = vadd.f32 %v871, %v1052
    %v1054 = vpop.f32.mrb[0].mxu0
    %1055 = vmatprep.mubr.f32.mxu0 0.0
    %1056 = vmatmul.mubr.f32.gmra.mrb[0].mxu0 %v916
    %v1057 = vpop.f32.mrb[0].mxu0
    %v1058 = vadd.f32 %v871, %v1057
    %v1059 = vpop.f32.mrb[0].mxu0
    %1060 = vmatprep.mubr.f32.mxu0 0.0
    %1061 = vmatmul.mubr.f32.gmra.mrb[0].mxu0 %v919
    %v1062 = vpop.f32.mrb[0].mxu0
    %v1063 = vadd.f32 %v871, %v1062
    %v1064 = vpop.f32.mrb[0].mxu0
    %1065 = vdwg.mxu0
    %v1066 = vmul.f32 %v988, 0.5
    %v1067 = vmul.f32 %v993, 0.5
    %v1068 = vmul.f32 %v998, 0.5
    %v1069 = vmul.f32 %v1003, 0.5
    %v1070 = vmul.f32 %v1008, 0.5
    %v1071 = vmul.f32 %v1013, 0.5
    %v1072 = vmul.f32 %v1018, 0.5
    %v1073 = vmul.f32 %v1023, 0.5
    %v1074 = vmul.f32 %v1028, 0.5
    %v1075 = vmul.f32 %v1033, 0.5
    %v1076 = vmul.f32 %v1038, 0.5
    %v1077 = vmul.f32 %v1043, 0.5
    %v1078 = vmul.f32 %v1048, 0.5
    %v1079 = vmul.f32 %v1053, 0.5
    %v1080 = vmul.f32 %v1058, 0.5
    %v1081 = vmul.f32 %v1063, 0.5
    %v1082 = vmul.f32 %v988, 0.70710677
    %v1083 = vmul.f32 %v993, 0.70710677
    %v1084 = vmul.f32 %v998, 0.70710677
    %v1085 = vmul.f32 %v1003, 0.70710677
    %v1086 = vmul.f32 %v1008, 0.70710677
    %v1087 = vmul.f32 %v1013, 0.70710677
    %v1088 = vmul.f32 %v1018, 0.70710677
    %v1089 = vmul.f32 %v1023, 0.70710677
    %v1090 = vmul.f32 %v1028, 0.70710677
    %v1091 = vmul.f32 %v1033, 0.70710677
    %v1092 = vmul.f32 %v1038, 0.70710677
    %v1093 = vmul.f32 %v1043, 0.70710677
    %v1094 = vmul.f32 %v1048, 0.70710677
    %v1095 = vmul.f32 %v1053, 0.70710677
    %v1096 = vmul.f32 %v1058, 0.70710677
    %v1097 = vmul.f32 %v1063, 0.70710677
    %vm1098 = vcmp.ge.f32.partialorder %v1082, 0.0
    %vm1099 = vcmp.ge.f32.partialorder %v1083, 0.0
    %vm1100 = vcmp.ge.f32.partialorder %v1084, 0.0
    %vm1101 = vcmp.ge.f32.partialorder %v1085, 0.0
    %vm1102 = vcmp.ge.f32.partialorder %v1086, 0.0
    %vm1103 = vcmp.ge.f32.partialorder %v1087, 0.0
    %vm1104 = vcmp.ge.f32.partialorder %v1088, 0.0
    %vm1105 = vcmp.ge.f32.partialorder %v1089, 0.0
    %vm1106 = vcmp.ge.f32.partialorder %v1090, 0.0
    %vm1107 = vcmp.ge.f32.partialorder %v1091, 0.0
    %vm1108 = vcmp.ge.f32.partialorder %v1092, 0.0
    %vm1109 = vcmp.ge.f32.partialorder %v1093, 0.0
    %vm1110 = vcmp.ge.f32.partialorder %v1094, 0.0
    %vm1111 = vcmp.ge.f32.partialorder %v1095, 0.0
    %vm1112 = vcmp.ge.f32.partialorder %v1096, 0.0
    %vm1113 = vcmp.ge.f32.partialorder %v1097, 0.0
    %v1114 = vsel %vm1098, 1.0, -1.0
    %v1115 = vsel %vm1099, 1.0, -1.0
    %v1116 = vsel %vm1100, 1.0, -1.0
    %v1117 = vsel %vm1101, 1.0, -1.0
    %v1118 = vsel %vm1102, 1.0, -1.0
    %v1119 = vsel %vm1103, 1.0, -1.0
    %v1120 = vsel %vm1104, 1.0, -1.0
    %v1121 = vsel %vm1105, 1.0, -1.0
    %v1122 = vsel %vm1106, 1.0, -1.0
    %v1123 = vsel %vm1107, 1.0, -1.0
    %v1124 = vsel %vm1108, 1.0, -1.0
    %v1125 = vsel %vm1109, 1.0, -1.0
    %v1126 = vsel %vm1110, 1.0, -1.0
    %v1127 = vsel %vm1111, 1.0, -1.0
    %v1128 = vsel %vm1112, 1.0, -1.0
    %v1129 = vsel %vm1113, 1.0, -1.0
    %v1130 = vand.u32 2147483647, %v1082
    %v1131 = vand.u32 2147483647, %v1083
    %v1132 = vand.u32 2147483647, %v1084
    %v1133 = vand.u32 2147483647, %v1085
    %v1134 = vand.u32 2147483647, %v1086
    %v1135 = vand.u32 2147483647, %v1087
    %v1136 = vand.u32 2147483647, %v1088
    %v1137 = vand.u32 2147483647, %v1089
    %v1138 = vand.u32 2147483647, %v1090
    %v1139 = vand.u32 2147483647, %v1091
    %v1140 = vand.u32 2147483647, %v1092
    %v1141 = vand.u32 2147483647, %v1093
    %v1142 = vand.u32 2147483647, %v1094
    %v1143 = vand.u32 2147483647, %v1095
    %v1144 = vand.u32 2147483647, %v1096
    %v1145 = vand.u32 2147483647, %v1097
    %v1146 = vmul.f32 %v1130, 0.3275911
    %v1147 = vmul.f32 %v1131, 0.3275911
    %v1148 = vmul.f32 %v1132, 0.3275911
    %v1149 = vmul.f32 %v1133, 0.3275911
    %v1150 = vmul.f32 %v1134, 0.3275911
    %v1151 = vmul.f32 %v1135, 0.3275911
    %v1152 = vmul.f32 %v1136, 0.3275911
    %v1153 = vmul.f32 %v1137, 0.3275911
    %v1154 = vmul.f32 %v1138, 0.3275911
    %v1155 = vmul.f32 %v1139, 0.3275911
    %v1156 = vmul.f32 %v1140, 0.3275911
    %v1157 = vmul.f32 %v1141, 0.3275911
    %v1158 = vmul.f32 %v1142, 0.3275911
    %v1159 = vmul.f32 %v1143, 0.3275911
    %v1160 = vmul.f32 %v1144, 0.3275911
    %v1161 = vmul.f32 %v1145, 0.3275911
    %v1162 = vadd.f32 %v1146, 1.0
    %v1163 = vadd.f32 %v1147, 1.0
    %v1164 = vadd.f32 %v1148, 1.0
    %v1165 = vadd.f32 %v1149, 1.0
    %v1166 = vadd.f32 %v1150, 1.0
    %v1167 = vadd.f32 %v1151, 1.0
    %v1168 = vadd.f32 %v1152, 1.0
    %v1169 = vadd.f32 %v1153, 1.0
    %v1170 = vadd.f32 %v1154, 1.0
    %v1171 = vadd.f32 %v1155, 1.0
    %v1172 = vadd.f32 %v1156, 1.0
    %v1173 = vadd.f32 %v1157, 1.0
    %v1174 = vadd.f32 %v1158, 1.0
    %v1175 = vadd.f32 %v1159, 1.0
    %v1176 = vadd.f32 %v1160, 1.0
    %v1177 = vadd.f32 %v1161, 1.0
    %v1178 = vrcp.pop %v1162
    %v1179 = vrcp.pop %v1163
    %v1180 = vrcp.pop %v1164
    %v1181 = vrcp.pop %v1165
    %v1182 = vrcp.pop %v1166
    %v1183 = vrcp.pop %v1167
    %v1184 = vrcp.pop %v1168
    %v1185 = vrcp.pop %v1169
    %v1186 = vrcp.pop %v1170
    %v1187 = vrcp.pop %v1171
    %v1188 = vrcp.pop %v1172
    %v1189 = vrcp.pop %v1173
    %v1190 = vrcp.pop %v1174
    %v1191 = vrcp.pop %v1175
    %v1192 = vrcp.pop %v1176
    %v1193 = vrcp.pop %v1177
    %v1194 = vmul.f32 %v1178, 1.0614054
    %v1195 = vmul.f32 %v1179, 1.0614054
    %v1196 = vmul.f32 %v1180, 1.0614054
    %v1197 = vmul.f32 %v1181, 1.0614054
    %v1198 = vmul.f32 %v1182, 1.0614054
    %v1199 = vmul.f32 %v1183, 1.0614054
    %v1200 = vmul.f32 %v1184, 1.0614054
    %v1201 = vmul.f32 %v1185, 1.0614054
    %v1202 = vmul.f32 %v1186, 1.0614054
    %v1203 = vmul.f32 %v1187, 1.0614054
    %v1204 = vmul.f32 %v1188, 1.0614054
    %v1205 = vmul.f32 %v1189, 1.0614054
    %v1206 = vmul.f32 %v1190, 1.0614054
    %v1207 = vmul.f32 %v1191, 1.0614054
    %v1208 = vmul.f32 %v1192, 1.0614054
    %v1209 = vmul.f32 %v1193, 1.0614054
    %v1210 = vadd.f32 %v1194, -1.4531521
    %v1211 = vadd.f32 %v1195, -1.4531521
    %v1212 = vadd.f32 %v1196, -1.4531521
    %v1213 = vadd.f32 %v1197, -1.4531521
    %v1214 = vadd.f32 %v1198, -1.4531521
    %v1215 = vadd.f32 %v1199, -1.4531521
    %v1216 = vadd.f32 %v1200, -1.4531521
    %v1217 = vadd.f32 %v1201, -1.4531521
    %v1218 = vadd.f32 %v1202, -1.4531521
    %v1219 = vadd.f32 %v1203, -1.4531521
    %v1220 = vadd.f32 %v1204, -1.4531521
    %v1221 = vadd.f32 %v1205, -1.4531521
    %v1222 = vadd.f32 %v1206, -1.4531521
    %v1223 = vadd.f32 %v1207, -1.4531521
    %v1224 = vadd.f32 %v1208, -1.4531521
    %v1225 = vadd.f32 %v1209, -1.4531521
    %v1226 = vmul.f32 %v1178, %v1210
    %v1227 = vmul.f32 %v1179, %v1211
    %v1228 = vmul.f32 %v1180, %v1212
    %v1229 = vmul.f32 %v1181, %v1213
    %v1230 = vmul.f32 %v1182, %v1214
    %v1231 = vmul.f32 %v1183, %v1215
    %v1232 = vmul.f32 %v1184, %v1216
    %v1233 = vmul.f32 %v1185, %v1217
    %v1234 = vmul.f32 %v1186, %v1218
    %v1235 = vmul.f32 %v1187, %v1219
    %v1236 = vmul.f32 %v1188, %v1220
    %v1237 = vmul.f32 %v1189, %v1221
    %v1238 = vmul.f32 %v1190, %v1222
    %v1239 = vmul.f32 %v1191, %v1223
    %v1240 = vmul.f32 %v1192, %v1224
    %v1241 = vmul.f32 %v1193, %v1225
    %v1242 = vadd.f32 %v1226, 1.4214138
    %v1243 = vadd.f32 %v1227, 1.4214138
    %v1244 = vadd.f32 %v1228, 1.4214138
    %v1245 = vadd.f32 %v1229, 1.4214138
    %v1246 = vadd.f32 %v1230, 1.4214138
    %v1247 = vadd.f32 %v1231, 1.4214138
    %v1248 = vadd.f32 %v1232, 1.4214138
    %v1249 = vadd.f32 %v1233, 1.4214138
    %v1250 = vadd.f32 %v1234, 1.4214138
    %v1251 = vadd.f32 %v1235, 1.4214138
    %v1252 = vadd.f32 %v1236, 1.4214138
    %v1253 = vadd.f32 %v1237, 1.4214138
    %v1254 = vadd.f32 %v1238, 1.4214138
    %v1255 = vadd.f32 %v1239, 1.4214138
    %v1256 = vadd.f32 %v1240, 1.4214138
    %v1257 = vadd.f32 %v1241, 1.4214138
    %v1258 = vmul.f32 %v1178, %v1242
    %v1259 = vmul.f32 %v1179, %v1243
    %v1260 = vmul.f32 %v1180, %v1244
    %v1261 = vmul.f32 %v1181, %v1245
    %v1262 = vmul.f32 %v1182, %v1246
    %v1263 = vmul.f32 %v1183, %v1247
    %v1264 = vmul.f32 %v1184, %v1248
    %v1265 = vmul.f32 %v1185, %v1249
    %v1266 = vmul.f32 %v1186, %v1250
    %v1267 = vmul.f32 %v1187, %v1251
    %v1268 = vmul.f32 %v1188, %v1252
    %v1269 = vmul.f32 %v1189, %v1253
    %v1270 = vmul.f32 %v1190, %v1254
    %v1271 = vmul.f32 %v1191, %v1255
    %v1272 = vmul.f32 %v1192, %v1256
    %v1273 = vmul.f32 %v1193, %v1257
    %v1274 = vadd.f32 %v1258, -0.28449672
    %v1275 = vadd.f32 %v1259, -0.28449672
    %v1276 = vadd.f32 %v1260, -0.28449672
    %v1277 = vadd.f32 %v1261, -0.28449672
    %v1278 = vadd.f32 %v1262, -0.28449672
    %v1279 = vadd.f32 %v1263, -0.28449672
    %v1280 = vadd.f32 %v1264, -0.28449672
    %v1281 = vadd.f32 %v1265, -0.28449672
    %v1282 = vadd.f32 %v1266, -0.28449672
    %v1283 = vadd.f32 %v1267, -0.28449672
    %v1284 = vadd.f32 %v1268, -0.28449672
    %v1285 = vadd.f32 %v1269, -0.28449672
    %v1286 = vadd.f32 %v1270, -0.28449672
    %v1287 = vadd.f32 %v1271, -0.28449672
    %v1288 = vadd.f32 %v1272, -0.28449672
    %v1289 = vadd.f32 %v1273, -0.28449672
    %v1290 = vmul.f32 %v1178, %v1274
    %v1291 = vmul.f32 %v1179, %v1275
    %v1292 = vmul.f32 %v1180, %v1276
    %v1293 = vmul.f32 %v1181, %v1277
    %v1294 = vmul.f32 %v1182, %v1278
    %v1295 = vmul.f32 %v1183, %v1279
    %v1296 = vmul.f32 %v1184, %v1280
    %v1297 = vmul.f32 %v1185, %v1281
    %v1298 = vmul.f32 %v1186, %v1282
    %v1299 = vmul.f32 %v1187, %v1283
    %v1300 = vmul.f32 %v1188, %v1284
    %v1301 = vmul.f32 %v1189, %v1285
    %v1302 = vmul.f32 %v1190, %v1286
    %v1303 = vmul.f32 %v1191, %v1287
    %v1304 = vmul.f32 %v1192, %v1288
    %v1305 = vmul.f32 %v1193, %v1289
    %v1306 = vadd.f32 %v1290, 0.2548296
    %v1307 = vadd.f32 %v1291, 0.2548296
    %v1308 = vadd.f32 %v1292, 0.2548296
    %v1309 = vadd.f32 %v1293, 0.2548296
    %v1310 = vadd.f32 %v1294, 0.2548296
    %v1311 = vadd.f32 %v1295, 0.2548296
    %v1312 = vadd.f32 %v1296, 0.2548296
    %v1313 = vadd.f32 %v1297, 0.2548296
    %v1314 = vadd.f32 %v1298, 0.2548296
    %v1315 = vadd.f32 %v1299, 0.2548296
    %v1316 = vadd.f32 %v1300, 0.2548296
    %v1317 = vadd.f32 %v1301, 0.2548296
    %v1318 = vadd.f32 %v1302, 0.2548296
    %v1319 = vadd.f32 %v1303, 0.2548296
    %v1320 = vadd.f32 %v1304, 0.2548296
    %v1321 = vadd.f32 %v1305, 0.2548296
    %v1322 = vmul.f32 %v1178, %v1306
    %v1323 = vmul.f32 %v1179, %v1307
    %v1324 = vmul.f32 %v1180, %v1308
    %v1325 = vmul.f32 %v1181, %v1309
    %v1326 = vmul.f32 %v1182, %v1310
    %v1327 = vmul.f32 %v1183, %v1311
    %v1328 = vmul.f32 %v1184, %v1312
    %v1329 = vmul.f32 %v1185, %v1313
    %v1330 = vmul.f32 %v1186, %v1314
    %v1331 = vmul.f32 %v1187, %v1315
    %v1332 = vmul.f32 %v1188, %v1316
    %v1333 = vmul.f32 %v1189, %v1317
    %v1334 = vmul.f32 %v1190, %v1318
    %v1335 = vmul.f32 %v1191, %v1319
    %v1336 = vmul.f32 %v1192, %v1320
    %v1337 = vmul.f32 %v1193, %v1321
    %v1338 = vsub.f32 0.0, %v1130
    %v1339 = vsub.f32 0.0, %v1131
    %v1340 = vsub.f32 0.0, %v1132
    %v1341 = vsub.f32 0.0, %v1133
    %v1342 = vsub.f32 0.0, %v1134
    %v1343 = vsub.f32 0.0, %v1135
    %v1344 = vsub.f32 0.0, %v1136
    %v1345 = vsub.f32 0.0, %v1137
    %v1346 = vsub.f32 0.0, %v1138
    %v1347 = vsub.f32 0.0, %v1139
    %v1348 = vsub.f32 0.0, %v1140
    %v1349 = vsub.f32 0.0, %v1141
    %v1350 = vsub.f32 0.0, %v1142
    %v1351 = vsub.f32 0.0, %v1143
    %v1352 = vsub.f32 0.0, %v1144
    %v1353 = vsub.f32 0.0, %v1145
    %v1354 = vmul.f32 %v1338, %v1130
    %v1355 = vmul.f32 %v1339, %v1131
    %v1356 = vmul.f32 %v1340, %v1132
    %v1357 = vmul.f32 %v1341, %v1133
    %v1358 = vmul.f32 %v1342, %v1134
    %v1359 = vmul.f32 %v1343, %v1135
    %v1360 = vmul.f32 %v1344, %v1136
    %v1361 = vmul.f32 %v1345, %v1137
    %v1362 = vmul.f32 %v1346, %v1138
    %v1363 = vmul.f32 %v1347, %v1139
    %v1364 = vmul.f32 %v1348, %v1140
    %v1365 = vmul.f32 %v1349, %v1141
    %v1366 = vmul.f32 %v1350, %v1142
    %v1367 = vmul.f32 %v1351, %v1143
    %v1368 = vmul.f32 %v1352, %v1144
    %v1369 = vmul.f32 %v1353, %v1145
    %v1370 = vmul.f32 %v1354, 1.442695
    %v1371 = vpow.pop %v1370
    %v1372 = vmul.f32 %v1355, 1.442695
    %v1373 = vpow.pop %v1372
    %v1374 = vmul.f32 %v1356, 1.442695
    %v1375 = vpow.pop %v1374
    %v1376 = vmul.f32 %v1357, 1.442695
    %v1377 = vpow.pop %v1376
    %v1378 = vmul.f32 %v1358, 1.442695
    %v1379 = vpow.pop %v1378
    %v1380 = vmul.f32 %v1359, 1.442695
    %v1381 = vpow.pop %v1380
    %v1382 = vmul.f32 %v1360, 1.442695
    %v1383 = vpow.pop %v1382
    %v1384 = vmul.f32 %v1361, 1.442695
    %v1385 = vpow.pop %v1384
    %v1386 = vmul.f32 %v1362, 1.442695
    %v1387 = vpow.pop %v1386
    %v1388 = vmul.f32 %v1363, 1.442695
    %v1389 = vpow.pop %v1388
    %v1390 = vmul.f32 %v1364, 1.442695
    %v1391 = vpow.pop %v1390
    %v1392 = vmul.f32 %v1365, 1.442695
    %v1393 = vpow.pop %v1392
    %v1394 = vmul.f32 %v1366, 1.442695
    %v1395 = vpow.pop %v1394
    %v1396 = vmul.f32 %v1367, 1.442695
    %v1397 = vpow.pop %v1396
    %v1398 = vmul.f32 %v1368, 1.442695
    %v1399 = vpow.pop %v1398
    %v1400 = vmul.f32 %v1369, 1.442695
    %v1401 = vpow.pop %v1400
    %v1402 = vmul.f32 %v1322, %v1371
    %v1403 = vmul.f32 %v1323, %v1373
    %v1404 = vmul.f32 %v1324, %v1375
    %v1405 = vmul.f32 %v1325, %v1377
    %v1406 = vmul.f32 %v1326, %v1379
    %v1407 = vmul.f32 %v1327, %v1381
    %v1408 = vmul.f32 %v1328, %v1383
    %v1409 = vmul.f32 %v1329, %v1385
    %v1410 = vmul.f32 %v1330, %v1387
    %v1411 = vmul.f32 %v1331, %v1389
    %v1412 = vmul.f32 %v1332, %v1391
    %v1413 = vmul.f32 %v1333, %v1393
    %v1414 = vmul.f32 %v1334, %v1395
    %v1415 = vmul.f32 %v1335, %v1397
    %v1416 = vmul.f32 %v1336, %v1399
    %v1417 = vmul.f32 %v1337, %v1401
    %v1418 = vsub.f32 1.0, %v1402
    %v1419 = vsub.f32 1.0, %v1403
    %v1420 = vsub.f32 1.0, %v1404
    %v1421 = vsub.f32 1.0, %v1405
    %v1422 = vsub.f32 1.0, %v1406
    %v1423 = vsub.f32 1.0, %v1407
    %v1424 = vsub.f32 1.0, %v1408
    %v1425 = vsub.f32 1.0, %v1409
    %v1426 = vsub.f32 1.0, %v1410
    %v1427 = vsub.f32 1.0, %v1411
    %v1428 = vsub.f32 1.0, %v1412
    %v1429 = vsub.f32 1.0, %v1413
    %v1430 = vsub.f32 1.0, %v1414
    %v1431 = vsub.f32 1.0, %v1415
    %v1432 = vsub.f32 1.0, %v1416
    %v1433 = vsub.f32 1.0, %v1417
    %v1434 = vmul.f32 %v1114, %v1418
    %v1435 = vmul.f32 %v1115, %v1419
    %v1436 = vmul.f32 %v1116, %v1420
    %v1437 = vmul.f32 %v1117, %v1421
    %v1438 = vmul.f32 %v1118, %v1422
    %v1439 = vmul.f32 %v1119, %v1423
    %v1440 = vmul.f32 %v1120, %v1424
    %v1441 = vmul.f32 %v1121, %v1425
    %v1442 = vmul.f32 %v1122, %v1426
    %v1443 = vmul.f32 %v1123, %v1427
    %v1444 = vmul.f32 %v1124, %v1428
    %v1445 = vmul.f32 %v1125, %v1429
    %v1446 = vmul.f32 %v1126, %v1430
    %v1447 = vmul.f32 %v1127, %v1431
    %v1448 = vmul.f32 %v1128, %v1432
    %v1449 = vmul.f32 %v1129, %v1433
    %v1450 = vadd.f32 %v1434, 1.0
    %v1451 = vadd.f32 %v1435, 1.0
    %v1452 = vadd.f32 %v1436, 1.0
    %v1453 = vadd.f32 %v1437, 1.0
    %v1454 = vadd.f32 %v1438, 1.0
    %v1455 = vadd.f32 %v1439, 1.0
    %v1456 = vadd.f32 %v1440, 1.0
    %v1457 = vadd.f32 %v1441, 1.0
    %v1458 = vadd.f32 %v1442, 1.0
    %v1459 = vadd.f32 %v1443, 1.0
    %v1460 = vadd.f32 %v1444, 1.0
    %v1461 = vadd.f32 %v1445, 1.0
    %v1462 = vadd.f32 %v1446, 1.0
    %v1463 = vadd.f32 %v1447, 1.0
    %v1464 = vadd.f32 %v1448, 1.0
    %v1465 = vadd.f32 %v1449, 1.0
    %v1466 = vmul.f32 %v1066, %v1450
    %v1467 = vmul.f32 %v1067, %v1451
    %v1468 = vmul.f32 %v1068, %v1452
    %v1469 = vmul.f32 %v1069, %v1453
    %v1470 = vmul.f32 %v1070, %v1454
    %v1471 = vmul.f32 %v1071, %v1455
    %v1472 = vmul.f32 %v1072, %v1456
    %v1473 = vmul.f32 %v1073, %v1457
    %v1474 = vmul.f32 %v1074, %v1458
    %v1475 = vmul.f32 %v1075, %v1459
    %v1476 = vmul.f32 %v1076, %v1460
    %v1477 = vmul.f32 %v1077, %v1461
    %v1478 = vmul.f32 %v1078, %v1462
    %v1479 = vmul.f32 %v1079, %v1463
    %v1480 = vmul.f32 %v1080, %v1464
    %v1481 = vmul.f32 %v1081, %v1465
    %v1482 = vld [vmem:[%s7] sm:$0xff]
    %v1483 = vld [vmem:[%s7 + $0x8] sm:$0xff]
    %v1484 = vld [vmem:[%s7 + $0x10] sm:$0xff]
    %v1485 = vld [vmem:[%s7 + $0x18] sm:$0xff]
    %v1486 = vld [vmem:[%s7 + $0x20] sm:$0xff]
    %v1487 = vld [vmem:[%s7 + $0x28] sm:$0xff]
    %v1488 = vld [vmem:[%s7 + $0x30] sm:$0xff]
    %v1489 = vld [vmem:[%s7 + $0x38] sm:$0xff]
    %v1490 = vld [vmem:[%s7 + $0x40] sm:$0xff]
    %v1491 = vld [vmem:[%s7 + $0x48] sm:$0xff]
    %v1492 = vld [vmem:[%s7 + $0x50] sm:$0xff]
    %v1493 = vld [vmem:[%s7 + $0x58] sm:$0xff]
    %v1494 = vld [vmem:[%s7 + $0x60] sm:$0xff]
    %v1495 = vld [vmem:[%s7 + $0x68] sm:$0xff]
    %v1496 = vld [vmem:[%s7 + $0x70] sm:$0xff]
    %v1497 = vld [vmem:[%s7 + $0x78] sm:$0xff]
    %v1498 = vlaneseq
    %v1499 = vshrl.u32 %v1498, 7
    %v1500 = vsub.s32 5, %v1499
    %v1501 = vrot.slane %v30, %v1500
    %1502 = vmatprep.subr.mxu0 0.0
    %1503 = vmatpush1.msra.mxu0 %v1482
    %1504 = vmatprep.subr.mxu0 0.0
    %1505 = vmatpush1.msra.mxu0 %v1483
    %1506 = vmatprep.subr.mxu0 0.0
    %1507 = vmatpush1.msra.mxu0 %v1484
    %1508 = vmatprep.subr.mxu0 0.0
    %1509 = vmatpush1.msra.mxu0 %v1485
    %1510 = vmatprep.subr.mxu0 0.0
    %1511 = vmatpush1.msra.mxu0 %v1486
    %1512 = vmatprep.subr.mxu0 0.0
    %1513 = vmatpush1.msra.mxu0 %v1487
    %1514 = vmatprep.subr.mxu0 0.0
    %1515 = vmatpush1.msra.mxu0 %v1488
    %1516 = vmatprep.subr.mxu0 0.0
    %1517 = vmatpush1.msra.mxu0 %v1489
    %1518 = vmatprep.subr.mxu0 0.0
    %1519 = vmatpush1.msra.mxu0 %v1490
    %1520 = vmatprep.subr.mxu0 0.0
    %1521 = vmatpush1.msra.mxu0 %v1491
    %1522 = vmatprep.subr.mxu0 0.0
    %1523 = vmatpush1.msra.mxu0 %v1492
    %1524 = vmatprep.subr.mxu0 0.0
    %1525 = vmatpush1.msra.mxu0 %v1493
    %1526 = vmatprep.subr.mxu0 0.0
    %1527 = vmatpush1.msra.mxu0 %v1494
    %1528 = vmatprep.subr.mxu0 0.0
    %1529 = vmatpush1.msra.mxu0 %v1495
    %1530 = vmatprep.subr.mxu0 0.0
    %1531 = vmatpush1.msra.mxu0 %v1496
    %1532 = vmatprep.subr.mxu0 0.0
    %1533 = vmatpush1.msra.mxu0 %v1497
    %1534 = vmatprep.subr.mxu0 0.0
    %1535 = vmatpush1.msra.mxu0 0.0
    %1536 = vmatprep.subr.mxu0 0.0
    %1537 = vmatpush1.msra.mxu0 0.0
    %1538 = vmatprep.subr.mxu0 0.0
    %1539 = vmatpush1.msra.mxu0 0.0
    %1540 = vmatprep.subr.mxu0 0.0
    %1541 = vmatpush1.msra.mxu0 0.0
    %1542 = vmatprep.subr.mxu0 0.0
    %1543 = vmatpush1.msra.mxu0 0.0
    %1544 = vmatprep.subr.mxu0 0.0
    %1545 = vmatpush1.msra.mxu0 0.0
    %1546 = vmatprep.subr.mxu0 0.0
    %1547 = vmatpush1.msra.mxu0 0.0
    %1548 = vmatprep.subr.mxu0 0.0
    %1549 = vmatpush1.msra.mxu0 0.0
    %1550 = vmatprep.subr.mxu0 0.0
    %1551 = vmatpush1.msra.mxu0 0.0
    %1552 = vmatprep.subr.mxu0 0.0
    %1553 = vmatpush1.msra.mxu0 0.0
    %1554 = vmatprep.subr.mxu0 0.0
    %1555 = vmatpush1.msra.mxu0 0.0
    %1556 = vmatprep.subr.mxu0 0.0
    %1557 = vmatpush1.msra.mxu0 0.0
    %1558 = vmatprep.subr.mxu0 0.0
    %1559 = vmatpush1.msra.mxu0 0.0
    %1560 = vmatprep.subr.mxu0 0.0
    %1561 = vmatpush1.msra.mxu0 0.0
    %1562 = vmatprep.subr.mxu0 0.0
    %1563 = vmatpush1.msra.mxu0 0.0
    %1564 = vmatprep.subr.mxu0 0.0
    %1565 = vmatpush1.msra.mxu0 0.0
    %1566 = vmatprep.mubr.f32.mxu0 0.0
    %1567 = vmatmul.mubr.f32.gmra.mrb[0].mxu0 %v1466
    %v1568 = vpop.f32.mrb[0].mxu0
    %v1569 = vadd.f32 %v1501, %v1568
    %v1570 = vpop.f32.mrb[0].mxu0
    %1571 = vmatprep.mubr.f32.mxu0 0.0
    %1572 = vmatmul.mubr.f32.gmra.mrb[0].mxu0 %v1467
    %v1573 = vpop.f32.mrb[0].mxu0
    %v1574 = vadd.f32 %v1501, %v1573
    %v1575 = vpop.f32.mrb[0].mxu0
    %1576 = vmatprep.mubr.f32.mxu0 0.0
    %1577 = vmatmul.mubr.f32.gmra.mrb[0].mxu0 %v1468
    %v1578 = vpop.f32.mrb[0].mxu0
    %v1579 = vadd.f32 %v1501, %v1578
    %v1580 = vpop.f32.mrb[0].mxu0
    %1581 = vmatprep.mubr.f32.mxu0 0.0
    %1582 = vmatmul.mubr.f32.gmra.mrb[0].mxu0 %v1469
    %v1583 = vpop.f32.mrb[0].mxu0
    %v1584 = vadd.f32 %v1501, %v1583
    %v1585 = vpop.f32.mrb[0].mxu0
    %1586 = vmatprep.mubr.f32.mxu0 0.0
    %1587 = vmatmul.mubr.f32.gmra.mrb[0].mxu0 %v1470
    %v1588 = vpop.f32.mrb[0].mxu0
    %v1589 = vadd.f32 %v1501, %v1588
    %v1590 = vpop.f32.mrb[0].mxu0
    %1591 = vmatprep.mubr.f32.mxu0 0.0
    %1592 = vmatmul.mubr.f32.gmra.mrb[0].mxu0 %v1471
    %v1593 = vpop.f32.mrb[0].mxu0
    %v1594 = vadd.f32 %v1501, %v1593
    %v1595 = vpop.f32.mrb[0].mxu0
    %1596 = vmatprep.mubr.f32.mxu0 0.0
    %1597 = vmatmul.mubr.f32.gmra.mrb[0].mxu0 %v1472
    %v1598 = vpop.f32.mrb[0].mxu0
    %v1599 = vadd.f32 %v1501, %v1598
    %v1600 = vpop.f32.mrb[0].mxu0
    %1601 = vmatprep.mubr.f32.mxu0 0.0
    %1602 = vmatmul.mubr.f32.gmra.mrb[0].mxu0 %v1473
    %v1603 = vpop.f32.mrb[0].mxu0
    %v1604 = vadd.f32 %v1501, %v1603
    %v1605 = vpop.f32.mrb[0].mxu0
    %1606 = vmatprep.mubr.f32.mxu0 0.0
    %1607 = vmatmul.mubr.f32.gmra.mrb[0].mxu0 %v1474
    %v1608 = vpop.f32.mrb[0].mxu0
    %v1609 = vadd.f32 %v1501, %v1608
    %v1610 = vpop.f32.mrb[0].mxu0
    %1611 = vmatprep.mubr.f32.mxu0 0.0
    %1612 = vmatmul.mubr.f32.gmra.mrb[0].mxu0 %v1475
    %v1613 = vpop.f32.mrb[0].mxu0
    %v1614 = vadd.f32 %v1501, %v1613
    %v1615 = vpop.f32.mrb[0].mxu0
    %1616 = vmatprep.mubr.f32.mxu0 0.0
    %1617 = vmatmul.mubr.f32.gmra.mrb[0].mxu0 %v1476
    %v1618 = vpop.f32.mrb[0].mxu0
    %v1619 = vadd.f32 %v1501, %v1618
    %v1620 = vpop.f32.mrb[0].mxu0
    %1621 = vmatprep.mubr.f32.mxu0 0.0
    %1622 = vmatmul.mubr.f32.gmra.mrb[0].mxu0 %v1477
    %v1623 = vpop.f32.mrb[0].mxu0
    %v1624 = vadd.f32 %v1501, %v1623
    %v1625 = vpop.f32.mrb[0].mxu0
    %1626 = vmatprep.mubr.f32.mxu0 0.0
    %1627 = vmatmul.mubr.f32.gmra.mrb[0].mxu0 %v1478
    %v1628 = vpop.f32.mrb[0].mxu0
    %v1629 = vadd.f32 %v1501, %v1628
    %v1630 = vpop.f32.mrb[0].mxu0
    %1631 = vmatprep.mubr.f32.mxu0 0.0
    %1632 = vmatmul.mubr.f32.gmra.mrb[0].mxu0 %v1479
    %v1633 = vpop.f32.mrb[0].mxu0
    %v1634 = vadd.f32 %v1501, %v1633
    %v1635 = vpop.f32.mrb[0].mxu0
    %1636 = vmatprep.mubr.f32.mxu0 0.0
    %1637 = vmatmul.mubr.f32.gmra.mrb[0].mxu0 %v1480
    %v1638 = vpop.f32.mrb[0].mxu0
    %v1639 = vadd.f32 %v1501, %v1638
    %v1640 = vpop.f32.mrb[0].mxu0
    %1641 = vmatprep.mubr.f32.mxu0 0.0
    %1642 = vmatmul.mubr.f32.gmra.mrb[0].mxu0 %v1481
    %v1643 = vpop.f32.mrb[0].mxu0
    %v1644 = vadd.f32 %v1501, %v1643
    %v1645 = vpop.f32.mrb[0].mxu0
    %1646 = vdwg.mxu0
    %v1647 = vadd.f32 %v846, %v1569
    %v1648 = vadd.f32 %v847, %v1574
    %v1649 = vadd.f32 %v848, %v1579
    %v1650 = vadd.f32 %v849, %v1584
    %v1651 = vadd.f32 %v850, %v1589
    %v1652 = vadd.f32 %v851, %v1594
    %v1653 = vadd.f32 %v852, %v1599
    %v1654 = vadd.f32 %v853, %v1604
    %v1655 = vadd.f32 %v854, %v1609
    %v1656 = vadd.f32 %v855, %v1614
    %v1657 = vadd.f32 %v856, %v1619
    %v1658 = vadd.f32 %v857, %v1624
    %v1659 = vadd.f32 %v858, %v1629
    %v1660 = vadd.f32 %v859, %v1634
    %v1661 = vadd.f32 %v860, %v1639
    %v1662 = vadd.f32 %v861, %v1644
    %1663 = vst.msk [vmem:[#allocation2] sm:$0xff] %vm47, %v1647
    %1664 = vst.msk [vmem:[#allocation2 + $0x8] sm:$0xff] %vm47, %v1648
    %1665 = vst.msk [vmem:[#allocation2 + $0x10] sm:$0xff] %vm47, %v1649
    %1666 = vst.msk [vmem:[#allocation2 + $0x18] sm:$0xff] %vm47, %v1650
    %1667 = vst.msk [vmem:[#allocation2 + $0x20] sm:$0xff] %vm47, %v1651
    %1668 = vst.msk [vmem:[#allocation2 + $0x28] sm:$0xff] %vm47, %v1652
    %1669 = vst.msk [vmem:[#allocation2 + $0x30] sm:$0xff] %vm47, %v1653
    %1670 = vst.msk [vmem:[#allocation2 + $0x38] sm:$0xff] %vm47, %v1654
    %1671 = vst.msk [vmem:[#allocation2 + $0x40] sm:$0xff] %vm47, %v1655
    %1672 = vst.msk [vmem:[#allocation2 + $0x48] sm:$0xff] %vm47, %v1656
    %1673 = vst.msk [vmem:[#allocation2 + $0x50] sm:$0xff] %vm47, %v1657
    %1674 = vst.msk [vmem:[#allocation2 + $0x58] sm:$0xff] %vm47, %v1658
    %1675 = vst.msk [vmem:[#allocation2 + $0x60] sm:$0xff] %vm47, %v1659
    %1676 = vst.msk [vmem:[#allocation2 + $0x68] sm:$0xff] %vm47, %v1660
    %1677 = vst.msk [vmem:[#allocation2 + $0x70] sm:$0xff] %vm47, %v1661
    %1678 = vst.msk [vmem:[#allocation2 + $0x78] sm:$0xff] %vm47, %v1662
    // Predicated region
    $region34: #{cross_attention_block.1} parent=1 // pred_check
      _
    $region35: #{cross_attention_block.1} parent=1 // pred_check_branch
      %1680 = sbr.rel (0) target = $region37
    $region36: #{cross_attention_block.1} parent=1 // pred_region
      %s1682 = ssub.s32 2048, 2048
      %1683 = vsyncadd [#allocation3], %s1682
      %s1684 = sshll.u32 [#allocation2], 4
      %s1685 = int_to_ptr.vmem [resolvable:$true] %s1684
      %1690 = dma.vmem_to_hbm [thread:$0]  %s1685, 2048, %s8, [#allocation3], 128, 128, 8
    $region37: #{cross_attention_block.1} parent=1 // pred_fallthru
      _
    // Predicated region
    $region38: #{cross_attention_block.1} parent=1 // pred_check
      _
    $region39: #{cross_attention_block.1} parent=1 // pred_check_branch
      %1692 = sbr.rel (0) target = $region41
    $region40: #{cross_attention_block.1} parent=1 // pred_region
      %1693 = dma.done [#allocation3], 2048
    $region41: #{cross_attention_block.1} parent=1 // pred_fallthru
      _
    %1694 = vsyncpa [#allocation3], 1

</llo_original>
